<compile_context>
chip_gen: v5e
topology: v5e:2x2
jax: 0.10.0
libtpu: 0.0.40
codegen_flags: <defaults>
</compile_context>

<pallas_src>
import numpy as np
import jax
import jax.numpy as jnp
from jax import lax
from jax.experimental import pallas as pl
from jax.experimental.pallas import tpu as pltpu

EPS = 1e-5
LANES = 128


# ---------------------------------------------------------------------------
# Fused kernel: whole network forward for Bb images per grid step
# ---------------------------------------------------------------------------
def _fused_kernel(x_ref, t1_ref, s1_ref, sc1_ref, sh1_ref,
                  t3_ref, s3_ref, sh3_ref,
                  t4_ref, s4_ref, sc4_ref, sh4_ref,
                  ul_ref, msel_ref, slrow_ref, f_ref, bl_ref, o_ref):
    f32 = jnp.float32
    bf16 = jnp.bfloat16

    def conv(a, t_ref, s_ref, kh):
        # 1) one wide bf16 tap matmul (W-taps/stride/pad, + any folded pooling)
        y = jnp.dot(a.astype(bf16), t_ref[...], preferred_element_type=f32)
        # 2) stack the KH 128-lane blocks along sublanes (aligned, layout-trivial)
        n = y.shape[1] // kh
        ystack = jnp.concatenate([y[:, dh * n:(dh + 1) * n] for dh in range(kh)],
                                 axis=0)
        # 3) one small f32 row-combine matmul (H-taps/stride/pad, per-image blocks)
        return jnp.dot(s_ref[...], ystack, preferred_element_type=f32)

    def approx_relu(z):
        return 0.117071 * z * z + 0.5 * z + 0.375373

    a = x_ref[0]                                                     # [Bb*32, 128]

    # conv1 (5x5, s1, p2) + BN1 (folded scale/shift) + approxRELU
    a = approx_relu(conv(a, t1_ref, s1_ref, 5) * sc1_ref[...] + sh1_ref[...])
    # avg-pool1 (3x3/9) is folded into T3/S3; conv3 (3x3, s2, p1) + bias
    a = conv(a, t3_ref, s3_ref, 3) + sh3_ref[...]                    # [Bb*16, 128]
    # conv4 (3x3, s2, p1) + BN3 (folded) + approxRELU
    a = approx_relu(conv(a, t4_ref, s4_ref, 3) * sc4_ref[...] + sh4_ref[...])
    # avg-pool2 + NCHW flatten + linear, all folded into UL2 / Msel / SLrow / F
    y = jnp.dot(a.astype(bf16), ul_ref[...], preferred_element_type=f32)  # [Bb*8,128]
    y = y * msel_ref[...]                                            # keep own h-block
    cs = jnp.dot(slrow_ref[...], y, preferred_element_type=f32)      # [Bb, 128]
    o_ref[0] = jnp.dot(cs, f_ref[...], preferred_element_type=f32) + bl_ref[...]


# ---------------------------------------------------------------------------
# Host-side precomputation (numpy, one-time)
# ---------------------------------------------------------------------------
def _tap(w_dh, w_in, w_out, stride, pad):
    # w_dh: [KW, Ci, Co] -> [w_in*Ci, w_out*Co]  (W-taps, W-stride, W-padding)
    kw, ci, co = w_dh.shape
    t = np.zeros((w_in * ci, w_out * co), np.float32)
    for wo in range(w_out):
        for dw in range(kw):
            wi = wo * stride + dw - pad
            if 0 <= wi < w_in:
                t[wi * ci:(wi + 1) * ci, wo * co:(wo + 1) * co] = w_dh[dw]
    return t


def _rowsel(h_out, h_in, stride, pad, dh):
    m = np.zeros((h_out, h_in), np.float32)
    for ho in range(h_out):
        hi = ho * stride + dh - pad
        if 0 <= hi < h_in:
            m[ho, hi] = 1.0
    return m


def _band(n):
    b = np.zeros((n, n), np.float32)
    for i in range(n):
        b[i, max(0, i - 1):min(n, i + 2)] = 1.0
    return b


def _build_sblk(row_mats, bb):
    # per-dh [H_out, H_in] row matrices -> block matrix [bb*H_out, KH*bb*H_in]
    kh = len(row_mats)
    h_out, h_in = row_mats[0].shape
    s = np.zeros((bb * h_out, kh * bb * h_in), np.float32)
    for dh in range(kh):
        for i in range(bb):
            r0, c0 = i * h_out, dh * bb * h_in + i * h_in
            s[r0:r0 + h_out, c0:c0 + h_in] = row_mats[dh]
    return s


def prepare_params(p, bb, height=32, width=32, eps=EPS):
    f = lambda a: np.asarray(a, np.float32)
    w1, b1 = f(p["w1"]), f(p["b1"])
    g1, be1, m1, v1 = f(p["bn1_gamma"]), f(p["bn1_beta"]), f(p["bn1_mean"]), f(p["bn1_var"])
    w3, b3 = f(p["w3"]), f(p["b3"])
    w4, b4 = f(p["w4"]), f(p["b4"])
    g3, be3, m3, v3 = f(p["bn3_gamma"]), f(p["bn3_beta"]), f(p["bn3_mean"]), f(p["bn3_var"])
    wl, bl = f(p["wl"]), f(p["bl"])

    cin, c1 = w1.shape[2], w1.shape[3]
    c3, c4 = w3.shape[3], w4.shape[3]
    H1 = W1 = height
    H3 = W3 = height // 2
    H4 = W4 = height // 4
    n_cls = wl.shape[1]
    assert W1 * c1 == 128 and W3 * c3 == 128 and W4 * c4 == 128  # wm=1 lane layout

    # conv1: 5 tap blocks (input lanes padded 96 -> 128) + block-diag row combine
    t1_blocks = []
    for dh in range(5):
        t = _tap(w1[dh], W1, W1, 1, 2)                         # [96, 128]
        tp = np.zeros((LANES, W1 * c1), np.float32)
        tp[:W1 * cin, :] = t
        t1_blocks.append(tp)
    T1 = np.concatenate(t1_blocks, axis=1)                     # [128, 640]
    S1 = _build_sblk([_rowsel(H1, H1, 1, 2, dh) for dh in range(5)], bb)

    # conv3 with avg-pool1 (3x3, /9, zero-pad) folded in: pool is separable,
    #   pool(y) = (1/9) * BH1 @ y @ BW1, so fold (1/3)*BW1 into the taps and
    #   (1/3)*BH1 into the row-combine matrices.
    BH1 = _band(H1)
    BW1 = np.kron(_band(W1), np.eye(c1, dtype=np.float32))     # [128, 128]
    T3 = np.concatenate(
        [(1.0 / 3.0) * (BW1 @ _tap(w3[dh], W1, W3, 2, 1)) for dh in range(3)], axis=1)
    S3 = _build_sblk(
        [(1.0 / 3.0) * (_rowsel(H3, H1, 2, 1, dh) @ BH1) for dh in range(3)], bb)

    # conv4 (no pool in front)
    T4 = np.concatenate([_tap(w4[dh], W3, W4, 2, 1) for dh in range(3)], axis=1)
    S4 = _build_sblk([_rowsel(H4, H3, 2, 1, dh) for dh in range(3)], bb)

    # BatchNorm (inference / running stats) folded into per-lane scale + shift
    s1v = g1 / np.sqrt(v1 + eps)
    sc1 = np.tile(s1v, W1)[None, :]
    sh1 = np.tile((b1 - m1) * s1v + be1, W1)[None, :]
    sh3 = np.tile(b3, W3)[None, :]
    s3v = g3 / np.sqrt(v3 + eps)
    sc4 = np.tile(s3v, W4)[None, :]
    sh4 = np.tile((b4 - m3) * s3v + be3, W4)[None, :]

    # linear: fold avg-pool2 and the NCHW flatten into the weights
    ULraw = np.zeros((H4, W4 * c4, n_cls), np.float32)
    for h in range(H4):
        for w in range(W4):
            for c in range(c4):
                ULraw[h, w * c4 + c, :] = wl[c * H4 * W4 + h * W4 + w, :]
    BH2 = _band(H4)
    BW2 = np.kron(_band(W4), np.eye(c4, dtype=np.float32))
    ULpool = (1.0 / 9.0) * np.einsum('hk,lw,hwn->kln', BH2, BW2, ULraw)

    blk = LANES // H4                      # 16 lanes per h-block
    assert n_cls <= blk
    UL2 = np.zeros((W4 * c4, H4 * blk), np.float32)
    for h in range(H4):
        UL2[:, h * blk:h * blk + n_cls] = ULpool[h]
    Msel = np.zeros((bb * H4, H4 * blk), np.float32)
    for r in range(bb * H4):
        h = r % H4
        Msel[r, h * blk:(h + 1) * blk] = 1.0
    SL = np.zeros((bb, bb * H4), np.float32)
    for i in range(bb):
        SL[i, i * H4:(i + 1) * H4] = 1.0
    F = np.zeros((H4 * blk, n_cls), np.float32)
    for h in range(H4):
        for n in range(n_cls):
            F[h * blk + n, n] = 1.0
    blv = bl[None, :]

    bf = jnp.bfloat16
    args = (jnp.asarray(T1, bf), jnp.asarray(S1), jnp.asarray(sc1), jnp.asarray(sh1),
            jnp.asarray(T3, bf), jnp.asarray(S3), jnp.asarray(sh3),
            jnp.asarray(T4, bf), jnp.asarray(S4), jnp.asarray(sc4), jnp.asarray(sh4),
            jnp.asarray(UL2, bf), jnp.asarray(Msel), jnp.asarray(SL),
            jnp.asarray(F), jnp.asarray(blv))
    meta = dict(bb=bb, lanes=LANES)
    return args, meta


# ---------------------------------------------------------------------------
# Forward wrapper: one pallas_call, grid over image blocks
# ---------------------------------------------------------------------------
def shallow_ext_forward(x_nchw, prep):
    args, meta = prep
    bb, lanes = meta["bb"], meta["lanes"]
    B, cin, H, W = x_nchw.shape
    assert B % bb == 0
    nblk = B // bb
    n_cls = args[-1].shape[-1]

    # NCHW -> lane-dense [H, W*C] slabs, pad to 128 lanes, group bb images / step.
    x2 = jnp.transpose(x_nchw, (0, 2, 3, 1)).reshape(B, H, W * cin)
    x2 = jnp.pad(x2, ((0, 0), (0, 0), (0, lanes - W * cin)))
    x2 = x2.reshape(nblk, bb * H, lanes)

    in_specs = [pl.BlockSpec((1, bb * H, lanes), lambda b: (b, 0, 0))]
    in_specs += [pl.BlockSpec(a.shape, lambda b: (0, 0)) for a in args]

    out = pl.pallas_call(
        _fused_kernel,
        out_shape=jax.ShapeDtypeStruct((nblk, bb, n_cls), jnp.float32),
        grid_spec=pltpu.PrefetchScalarGridSpec(
            num_scalar_prefetch=0,
            grid=(nblk,),
            in_specs=in_specs,
            out_specs=pl.BlockSpec((1, bb, n_cls), lambda b: (b, 0, 0)),
        ),
        compiler_params=pltpu.CompilerParams(dimension_semantics=("parallel",)),
    )(x2, *args)
    return out.reshape(B, n_cls)


# ---------------------------------------------------------------------------
# Deterministic parameter init (shapes follow shallow_ext(width_multiplier=1))
# ---------------------------------------------------------------------------
def init_params(key, wm=1):
    ks = jax.random.split(key, 16)
    c1, c3, c4 = 4 * wm, 8 * wm, 16 * wm
    p = {}
    p["w1"] = 0.1 * jax.random.normal(ks[0], (5, 5, 3, c1), jnp.float32)   # HWIO
    p["b1"] = 0.1 * jax.random.normal(ks[1], (c1,), jnp.float32)
    p["bn1_gamma"] = 1.0 + 0.1 * jax.random.normal(ks[2], (c1,), jnp.float32)
    p["bn1_beta"] = 0.1 * jax.random.normal(ks[3], (c1,), jnp.float32)
    p["bn1_mean"] = 0.05 * jax.random.normal(ks[4], (c1,), jnp.float32)
    p["bn1_var"] = 1.0 + 0.1 * jax.random.uniform(ks[5], (c1,), jnp.float32)
    p["w3"] = 0.1 * jax.random.normal(ks[6], (3, 3, c1, c3), jnp.float32)
    p["b3"] = 0.1 * jax.random.normal(ks[7], (c3,), jnp.float32)
    p["w4"] = 0.1 * jax.random.normal(ks[8], (3, 3, c3, c4), jnp.float32)
    p["b4"] = 0.1 * jax.random.normal(ks[9], (c4,), jnp.float32)
    p["bn3_gamma"] = 1.0 + 0.1 * jax.random.normal(ks[10], (c4,), jnp.float32)
    p["bn3_beta"] = 0.1 * jax.random.normal(ks[11], (c4,), jnp.float32)
    p["bn3_mean"] = 0.05 * jax.random.normal(ks[12], (c4,), jnp.float32)
    p["bn3_var"] = 1.0 + 0.1 * jax.random.uniform(ks[13], (c4,), jnp.float32)
    p["wl"] = 0.05 * jax.random.normal(ks[14], (64 * c4, 10), jnp.float32)  # 1024 -> 10
    p["bl"] = 0.05 * jax.random.normal(ks[15], (10,), jnp.float32)
    return p


# ---------------------------------------------------------------------------
# Pure-JAX reference (for correctness check)
# ---------------------------------------------------------------------------
def ref_forward(x_nchw, p):
    x = jnp.transpose(x_nchw, (0, 2, 3, 1))
    dn = ("NHWC", "HWIO", "NHWC")
    hp = lax.Precision.HIGHEST

    def pool(v):
        return lax.reduce_window(
            v, 0.0, lax.add, (1, 3, 3, 1), (1, 1, 1, 1),
            [(0, 0), (1, 1), (1, 1), (0, 0)]) / 9.0

    def act(v):
        return 0.117071 * v * v + 0.5 * v + 0.375373

    y = lax.conv_general_dilated(x, p["w1"], (1, 1), [(2, 2), (2, 2)],
                                 dimension_numbers=dn, precision=hp) + p["b1"]
    y = (y - p["bn1_mean"]) / jnp.sqrt(p["bn1_var"] + EPS) * p["bn1_gamma"] + p["bn1_beta"]
    y = pool(act(y))
    y = lax.conv_general_dilated(y, p["w3"], (2, 2), [(1, 1), (1, 1)],
                                 dimension_numbers=dn, precision=hp) + p["b3"]
    y = lax.conv_general_dilated(y, p["w4"], (2, 2), [(1, 1), (1, 1)],
                                 dimension_numbers=dn, precision=hp) + p["b4"]
    y = (y - p["bn3_mean"]) / jnp.sqrt(p["bn3_var"] + EPS) * p["bn3_gamma"] + p["bn3_beta"]
    y = pool(act(y))
    B = y.shape[0]
    y = jnp.transpose(y, (0, 3, 1, 2)).reshape(B, -1)
    return jnp.dot(y, p["wl"], precision=hp) + p["bl"]


if __name__ == "__main__":
    key = jax.random.PRNGKey(0)
    kx, kp = jax.random.split(key)
    # Linear(1024) implies 32x32 spatial input (16ch * 8 * 8); batch = 2.
    x = jax.random.normal(kx, (2, 3, 32, 32), dtype=jnp.float32)
    params = init_params(kp, wm=1)
    prep = prepare_params(params, bb=2)          # 2 images per grid step

    out = shallow_ext_forward(x, prep)
    out = jax.block_until_ready(out)

    ref = ref_forward(x, params)
    np.testing.assert_allclose(np.asarray(out), np.asarray(ref), rtol=5e-2, atol=5e-2)

    print("KERNEL_OK")
</pallas_src>

<mosaic_0001>
module attributes {stable_mosaic.version = 11 : i64} {
  func.func @_fused_kernel(%arg0: i32, %arg1: memref<1x64x128xf32, #tpu.memory_space<vmem>>, %arg2: memref<128x640xbf16, #tpu.memory_space<vmem>>, %arg3: memref<64x320xf32, #tpu.memory_space<vmem>>, %arg4: memref<1x128xf32, #tpu.memory_space<vmem>>, %arg5: memref<1x128xf32, #tpu.memory_space<vmem>>, %arg6: memref<128x384xbf16, #tpu.memory_space<vmem>>, %arg7: memref<32x192xf32, #tpu.memory_space<vmem>>, %arg8: memref<1x128xf32, #tpu.memory_space<vmem>>, %arg9: memref<128x384xbf16, #tpu.memory_space<vmem>>, %arg10: memref<16x96xf32, #tpu.memory_space<vmem>>, %arg11: memref<1x128xf32, #tpu.memory_space<vmem>>, %arg12: memref<1x128xf32, #tpu.memory_space<vmem>>, %arg13: memref<128x128xbf16, #tpu.memory_space<vmem>>, %arg14: memref<16x128xf32, #tpu.memory_space<vmem>>, %arg15: memref<2x16xf32, #tpu.memory_space<vmem>>, %arg16: memref<128x10xf32, #tpu.memory_space<vmem>>, %arg17: memref<1x10xf32, #tpu.memory_space<vmem>>, %arg18: memref<1x2x10xf32, #tpu.memory_space<vmem>>) attributes {dimension_semantics = [#tpu.dimension_semantics<parallel>], iteration_bounds = array<i64: 1>, scalar_prefetch = 0 : i64, scratch_operands = 0 : i64, tpu.core_type = #tpu.core_type<tc>, window_params = [{transform_indices = @transform_0, window_bounds = array<i64: 1, 64, 128>}, {pipeline_mode = #tpu.pipeline_mode<synchronous>, transform_indices = @transform_1, window_bounds = array<i64: 128, 640>}, {pipeline_mode = #tpu.pipeline_mode<synchronous>, transform_indices = @transform_2, window_bounds = array<i64: 64, 320>}, {pipeline_mode = #tpu.pipeline_mode<synchronous>, transform_indices = @transform_3, window_bounds = array<i64: 1, 128>}, {pipeline_mode = #tpu.pipeline_mode<synchronous>, transform_indices = @transform_4, window_bounds = array<i64: 1, 128>}, {pipeline_mode = #tpu.pipeline_mode<synchronous>, transform_indices = @transform_5, window_bounds = array<i64: 128, 384>}, {pipeline_mode = #tpu.pipeline_mode<synchronous>, transform_indices = @transform_6, window_bounds = array<i64: 32, 192>}, {pipeline_mode = #tpu.pipeline_mode<synchronous>, transform_indices = @transform_7, window_bounds = array<i64: 1, 128>}, {pipeline_mode = #tpu.pipeline_mode<synchronous>, transform_indices = @transform_8, window_bounds = array<i64: 128, 384>}, {pipeline_mode = #tpu.pipeline_mode<synchronous>, transform_indices = @transform_9, window_bounds = array<i64: 16, 96>}, {pipeline_mode = #tpu.pipeline_mode<synchronous>, transform_indices = @transform_10, window_bounds = array<i64: 1, 128>}, {pipeline_mode = #tpu.pipeline_mode<synchronous>, transform_indices = @transform_11, window_bounds = array<i64: 1, 128>}, {pipeline_mode = #tpu.pipeline_mode<synchronous>, transform_indices = @transform_12, window_bounds = array<i64: 128, 128>}, {pipeline_mode = #tpu.pipeline_mode<synchronous>, transform_indices = @transform_13, window_bounds = array<i64: 16, 128>}, {pipeline_mode = #tpu.pipeline_mode<synchronous>, transform_indices = @transform_14, window_bounds = array<i64: 2, 16>}, {pipeline_mode = #tpu.pipeline_mode<synchronous>, transform_indices = @transform_15, window_bounds = array<i64: 128, 10>}, {pipeline_mode = #tpu.pipeline_mode<synchronous>, transform_indices = @transform_16, window_bounds = array<i64: 1, 10>}, {transform_indices = @transform_17, window_bounds = array<i64: 1, 2, 10>}]} {
    %c0 = arith.constant 0 : index
    %c0_0 = arith.constant 0 : index
    %c0_1 = arith.constant 0 : index
    %0 = vector.load %arg1[%c0, %c0_0, %c0_1] : memref<1x64x128xf32, #tpu.memory_space<vmem>>, vector<1x64x128xf32>
    %1 = vector.shape_cast %0 : vector<1x64x128xf32> to vector<64x128xf32>
    %2 = arith.truncf %1 : vector<64x128xf32> to vector<64x128xbf16>
    %c0_2 = arith.constant 0 : index
    %c0_3 = arith.constant 0 : index
    %3 = vector.load %arg2[%c0_2, %c0_3] : memref<128x640xbf16, #tpu.memory_space<vmem>>, vector<128x640xbf16>
    %cst = arith.constant dense<0.000000e+00> : vector<64x640xf32>
    %4 = tpu.matmul %2, %3, %cst {dimension_numbers = #tpu.dot_dimension_numbers<[1], [0], [0], [1], [0, 0, 1, 1], [], []>} : vector<64x128xbf16>, vector<128x640xbf16>, vector<64x640xf32> -> vector<64x640xf32>
    %5 = vector.extract_strided_slice %4 {offsets = [0, 0], sizes = [64, 128], strides = [1, 1]} : vector<64x640xf32> to vector<64x128xf32>
    %6 = vector.extract_strided_slice %4 {offsets = [0, 128], sizes = [64, 128], strides = [1, 1]} : vector<64x640xf32> to vector<64x128xf32>
    %7 = vector.extract_strided_slice %4 {offsets = [0, 256], sizes = [64, 128], strides = [1, 1]} : vector<64x640xf32> to vector<64x128xf32>
    %8 = vector.extract_strided_slice %4 {offsets = [0, 384], sizes = [64, 128], strides = [1, 1]} : vector<64x640xf32> to vector<64x128xf32>
    %9 = vector.extract_strided_slice %4 {offsets = [0, 512], sizes = [64, 128], strides = [1, 1]} : vector<64x640xf32> to vector<64x128xf32>
    %10 = tpu.concatenate %5, %6, %7, %8, %9 in 0 : vector<64x128xf32>, vector<64x128xf32>, vector<64x128xf32>, vector<64x128xf32>, vector<64x128xf32> -> vector<320x128xf32>
    %c0_4 = arith.constant 0 : index
    %c0_5 = arith.constant 0 : index
    %11 = vector.load %arg3[%c0_4, %c0_5] : memref<64x320xf32, #tpu.memory_space<vmem>>, vector<64x320xf32>
    %cst_6 = arith.constant dense<0.000000e+00> : vector<64x128xf32>
    %12 = tpu.matmul %11, %10, %cst_6 {dimension_numbers = #tpu.dot_dimension_numbers<[1], [0], [0], [1], [0, 0, 1, 1], [], []>} : vector<64x320xf32>, vector<320x128xf32>, vector<64x128xf32> -> vector<64x128xf32>
    %c0_7 = arith.constant 0 : index
    %c0_8 = arith.constant 0 : index
    %13 = vector.load %arg4[%c0_7, %c0_8] : memref<1x128xf32, #tpu.memory_space<vmem>>, vector<1x128xf32>
    %14 = vector.broadcast %13 : vector<1x128xf32> to vector<64x128xf32>
    %15 = arith.mulf %12, %14 : vector<64x128xf32>
    %c0_9 = arith.constant 0 : index
    %c0_10 = arith.constant 0 : index
    %16 = vector.load %arg5[%c0_9, %c0_10] : memref<1x128xf32, #tpu.memory_space<vmem>>, vector<1x128xf32>
    %17 = vector.broadcast %16 : vector<1x128xf32> to vector<64x128xf32>
    %18 = arith.addf %15, %17 : vector<64x128xf32>
    %cst_11 = arith.constant 1.170710e-01 : f32
    %19 = vector.broadcast %cst_11 : f32 to vector<64x128xf32>
    %20 = arith.mulf %19, %18 : vector<64x128xf32>
    %21 = arith.mulf %20, %18 : vector<64x128xf32>
    %cst_12 = arith.constant 5.000000e-01 : f32
    %22 = vector.broadcast %cst_12 : f32 to vector<64x128xf32>
    %23 = arith.mulf %22, %18 : vector<64x128xf32>
    %24 = arith.addf %21, %23 : vector<64x128xf32>
    %cst_13 = arith.constant 3.753730e-01 : f32
    %25 = vector.broadcast %cst_13 : f32 to vector<64x128xf32>
    %26 = arith.addf %24, %25 : vector<64x128xf32>
    %27 = arith.truncf %26 : vector<64x128xf32> to vector<64x128xbf16>
    %c0_14 = arith.constant 0 : index
    %c0_15 = arith.constant 0 : index
    %28 = vector.load %arg6[%c0_14, %c0_15] : memref<128x384xbf16, #tpu.memory_space<vmem>>, vector<128x384xbf16>
    %cst_16 = arith.constant dense<0.000000e+00> : vector<64x384xf32>
    %29 = tpu.matmul %27, %28, %cst_16 {dimension_numbers = #tpu.dot_dimension_numbers<[1], [0], [0], [1], [0, 0, 1, 1], [], []>} : vector<64x128xbf16>, vector<128x384xbf16>, vector<64x384xf32> -> vector<64x384xf32>
    %30 = vector.extract_strided_slice %29 {offsets = [0, 0], sizes = [64, 128], strides = [1, 1]} : vector<64x384xf32> to vector<64x128xf32>
    %31 = vector.extract_strided_slice %29 {offsets = [0, 128], sizes = [64, 128], strides = [1, 1]} : vector<64x384xf32> to vector<64x128xf32>
    %32 = vector.extract_strided_slice %29 {offsets = [0, 256], sizes = [64, 128], strides = [1, 1]} : vector<64x384xf32> to vector<64x128xf32>
    %33 = tpu.concatenate %30, %31, %32 in 0 : vector<64x128xf32>, vector<64x128xf32>, vector<64x128xf32> -> vector<192x128xf32>
    %c0_17 = arith.constant 0 : index
    %c0_18 = arith.constant 0 : index
    %34 = vector.load %arg7[%c0_17, %c0_18] : memref<32x192xf32, #tpu.memory_space<vmem>>, vector<32x192xf32>
    %cst_19 = arith.constant dense<0.000000e+00> : vector<32x128xf32>
    %35 = tpu.matmul %34, %33, %cst_19 {dimension_numbers = #tpu.dot_dimension_numbers<[1], [0], [0], [1], [0, 0, 1, 1], [], []>} : vector<32x192xf32>, vector<192x128xf32>, vector<32x128xf32> -> vector<32x128xf32>
    %c0_20 = arith.constant 0 : index
    %c0_21 = arith.constant 0 : index
    %36 = vector.load %arg8[%c0_20, %c0_21] : memref<1x128xf32, #tpu.memory_space<vmem>>, vector<1x128xf32>
    %37 = vector.broadcast %36 : vector<1x128xf32> to vector<32x128xf32>
    %38 = arith.addf %35, %37 : vector<32x128xf32>
    %39 = arith.truncf %38 : vector<32x128xf32> to vector<32x128xbf16>
    %c0_22 = arith.constant 0 : index
    %c0_23 = arith.constant 0 : index
    %40 = vector.load %arg9[%c0_22, %c0_23] : memref<128x384xbf16, #tpu.memory_space<vmem>>, vector<128x384xbf16>
    %cst_24 = arith.constant dense<0.000000e+00> : vector<32x384xf32>
    %41 = tpu.matmul %39, %40, %cst_24 {dimension_numbers = #tpu.dot_dimension_numbers<[1], [0], [0], [1], [0, 0, 1, 1], [], []>} : vector<32x128xbf16>, vector<128x384xbf16>, vector<32x384xf32> -> vector<32x384xf32>
    %42 = vector.extract_strided_slice %41 {offsets = [0, 0], sizes = [32, 128], strides = [1, 1]} : vector<32x384xf32> to vector<32x128xf32>
    %43 = vector.extract_strided_slice %41 {offsets = [0, 128], sizes = [32, 128], strides = [1, 1]} : vector<32x384xf32> to vector<32x128xf32>
    %44 = vector.extract_strided_slice %41 {offsets = [0, 256], sizes = [32, 128], strides = [1, 1]} : vector<32x384xf32> to vector<32x128xf32>
    %45 = tpu.concatenate %42, %43, %44 in 0 : vector<32x128xf32>, vector<32x128xf32>, vector<32x128xf32> -> vector<96x128xf32>
    %c0_25 = arith.constant 0 : index
    %c0_26 = arith.constant 0 : index
    %46 = vector.load %arg10[%c0_25, %c0_26] : memref<16x96xf32, #tpu.memory_space<vmem>>, vector<16x96xf32>
    %cst_27 = arith.constant dense<0.000000e+00> : vector<16x128xf32>
    %47 = tpu.matmul %46, %45, %cst_27 {dimension_numbers = #tpu.dot_dimension_numbers<[1], [0], [0], [1], [0, 0, 1, 1], [], []>} : vector<16x96xf32>, vector<96x128xf32>, vector<16x128xf32> -> vector<16x128xf32>
    %c0_28 = arith.constant 0 : index
    %c0_29 = arith.constant 0 : index
    %48 = vector.load %arg11[%c0_28, %c0_29] : memref<1x128xf32, #tpu.memory_space<vmem>>, vector<1x128xf32>
    %49 = vector.broadcast %48 : vector<1x128xf32> to vector<16x128xf32>
    %50 = arith.mulf %47, %49 : vector<16x128xf32>
    %c0_30 = arith.constant 0 : index
    %c0_31 = arith.constant 0 : index
    %51 = vector.load %arg12[%c0_30, %c0_31] : memref<1x128xf32, #tpu.memory_space<vmem>>, vector<1x128xf32>
    %52 = vector.broadcast %51 : vector<1x128xf32> to vector<16x128xf32>
    %53 = arith.addf %50, %52 : vector<16x128xf32>
    %cst_32 = arith.constant 1.170710e-01 : f32
    %54 = vector.broadcast %cst_32 : f32 to vector<16x128xf32>
    %55 = arith.mulf %54, %53 : vector<16x128xf32>
    %56 = arith.mulf %55, %53 : vector<16x128xf32>
    %cst_33 = arith.constant 5.000000e-01 : f32
    %57 = vector.broadcast %cst_33 : f32 to vector<16x128xf32>
    %58 = arith.mulf %57, %53 : vector<16x128xf32>
    %59 = arith.addf %56, %58 : vector<16x128xf32>
    %cst_34 = arith.constant 3.753730e-01 : f32
    %60 = vector.broadcast %cst_34 : f32 to vector<16x128xf32>
    %61 = arith.addf %59, %60 : vector<16x128xf32>
    %62 = arith.truncf %61 : vector<16x128xf32> to vector<16x128xbf16>
    %c0_35 = arith.constant 0 : index
    %c0_36 = arith.constant 0 : index
    %63 = vector.load %arg13[%c0_35, %c0_36] : memref<128x128xbf16, #tpu.memory_space<vmem>>, vector<128x128xbf16>
    %cst_37 = arith.constant dense<0.000000e+00> : vector<16x128xf32>
    %64 = tpu.matmul %62, %63, %cst_37 {dimension_numbers = #tpu.dot_dimension_numbers<[1], [0], [0], [1], [0, 0, 1, 1], [], []>} : vector<16x128xbf16>, vector<128x128xbf16>, vector<16x128xf32> -> vector<16x128xf32>
    %c0_38 = arith.constant 0 : index
    %c0_39 = arith.constant 0 : index
    %65 = vector.load %arg14[%c0_38, %c0_39] : memref<16x128xf32, #tpu.memory_space<vmem>>, vector<16x128xf32>
    %66 = arith.mulf %64, %65 : vector<16x128xf32>
    %c0_40 = arith.constant 0 : index
    %c0_41 = arith.constant 0 : index
    %67 = vector.load %arg15[%c0_40, %c0_41] : memref<2x16xf32, #tpu.memory_space<vmem>>, vector<2x16xf32>
    %cst_42 = arith.constant dense<0.000000e+00> : vector<2x128xf32>
    %68 = tpu.matmul %67, %66, %cst_42 {dimension_numbers = #tpu.dot_dimension_numbers<[1], [0], [0], [1], [0, 0, 1, 1], [], []>} : vector<2x16xf32>, vector<16x128xf32>, vector<2x128xf32> -> vector<2x128xf32>
    %c0_43 = arith.constant 0 : index
    %c0_44 = arith.constant 0 : index
    %69 = vector.load %arg16[%c0_43, %c0_44] : memref<128x10xf32, #tpu.memory_space<vmem>>, vector<128x10xf32>
    %cst_45 = arith.constant dense<0.000000e+00> : vector<2x10xf32>
    %70 = tpu.matmul %68, %69, %cst_45 {dimension_numbers = #tpu.dot_dimension_numbers<[1], [0], [0], [1], [0, 0, 1, 1], [], []>} : vector<2x128xf32>, vector<128x10xf32>, vector<2x10xf32> -> vector<2x10xf32>
    %c0_46 = arith.constant 0 : index
    %c0_47 = arith.constant 0 : index
    %71 = vector.load %arg17[%c0_46, %c0_47] : memref<1x10xf32, #tpu.memory_space<vmem>>, vector<1x10xf32>
    %72 = vector.broadcast %71 : vector<1x10xf32> to vector<2x10xf32>
    %73 = arith.addf %70, %72 : vector<2x10xf32>
    %c0_48 = arith.constant 0 : index
    %c0_49 = arith.constant 0 : index
    %c0_50 = arith.constant 0 : index
    %74 = vector.load %arg18[%c0_48, %c0_49, %c0_50] : memref<1x2x10xf32, #tpu.memory_space<vmem>>, vector<1x2x10xf32>
    %75 = vector.shape_cast %74 : vector<1x2x10xf32> to vector<2x10xf32>
    %76 = vector.shape_cast %73 : vector<2x10xf32> to vector<1x2x10xf32>
    tpu.vector_store %arg18[%c0_48, %c0_49, %c0_50], %76 {strides = array<i32>} : memref<1x2x10xf32, #tpu.memory_space<vmem>>, vector<1x2x10xf32>,
    return
  }
  func.func @transform_0(%arg0: i32) -> (i32, i32, i32) {
    %c0_i32 = arith.constant 0 : i32
    %c0_i32_0 = arith.constant 0 : i32
    %c0_i32_1 = arith.constant 0 : i32
    return %arg0, %c0_i32, %c0_i32_0 : i32, i32, i32
  }
  func.func @transform_1(%arg0: i32) -> (i32, i32) {
    %c0_i32 = arith.constant 0 : i32
    %c0_i32_0 = arith.constant 0 : i32
    %c0_i32_1 = arith.constant 0 : i32
    return %c0_i32, %c0_i32_0 : i32, i32
  }
  func.func @transform_2(%arg0: i32) -> (i32, i32) {
    %c0_i32 = arith.constant 0 : i32
    %c0_i32_0 = arith.constant 0 : i32
    %c0_i32_1 = arith.constant 0 : i32
    return %c0_i32, %c0_i32_0 : i32, i32
  }
  func.func @transform_3(%arg0: i32) -> (i32, i32) {
    %c0_i32 = arith.constant 0 : i32
    %c0_i32_0 = arith.constant 0 : i32
    %c0_i32_1 = arith.constant 0 : i32
    return %c0_i32, %c0_i32_0 : i32, i32
  }
  func.func @transform_4(%arg0: i32) -> (i32, i32) {
    %c0_i32 = arith.constant 0 : i32
    %c0_i32_0 = arith.constant 0 : i32
    %c0_i32_1 = arith.constant 0 : i32
    return %c0_i32, %c0_i32_0 : i32, i32
  }
  func.func @transform_5(%arg0: i32) -> (i32, i32) {
    %c0_i32 = arith.constant 0 : i32
    %c0_i32_0 = arith.constant 0 : i32
    %c0_i32_1 = arith.constant 0 : i32
    return %c0_i32, %c0_i32_0 : i32, i32
  }
  func.func @transform_6(%arg0: i32) -> (i32, i32) {
    %c0_i32 = arith.constant 0 : i32
    %c0_i32_0 = arith.constant 0 : i32
    %c0_i32_1 = arith.constant 0 : i32
    return %c0_i32, %c0_i32_0 : i32, i32
  }
  func.func @transform_7(%arg0: i32) -> (i32, i32) {
    %c0_i32 = arith.constant 0 : i32
    %c0_i32_0 = arith.constant 0 : i32
    %c0_i32_1 = arith.constant 0 : i32
    return %c0_i32, %c0_i32_0 : i32, i32
  }
  func.func @transform_8(%arg0: i32) -> (i32, i32) {
    %c0_i32 = arith.constant 0 : i32
    %c0_i32_0 = arith.constant 0 : i32
    %c0_i32_1 = arith.constant 0 : i32
    return %c0_i32, %c0_i32_0 : i32, i32
  }
  func.func @transform_9(%arg0: i32) -> (i32, i32) {
    %c0_i32 = arith.constant 0 : i32
    %c0_i32_0 = arith.constant 0 : i32
    %c0_i32_1 = arith.constant 0 : i32
    return %c0_i32, %c0_i32_0 : i32, i32
  }
  func.func @transform_10(%arg0: i32) -> (i32, i32) {
    %c0_i32 = arith.constant 0 : i32
    %c0_i32_0 = arith.constant 0 : i32
    %c0_i32_1 = arith.constant 0 : i32
    return %c0_i32, %c0_i32_0 : i32, i32
  }
  func.func @transform_11(%arg0: i32) -> (i32, i32) {
    %c0_i32 = arith.constant 0 : i32
    %c0_i32_0 = arith.constant 0 : i32
    %c0_i32_1 = arith.constant 0 : i32
    return %c0_i32, %c0_i32_0 : i32, i32
  }
  func.func @transform_12(%arg0: i32) -> (i32, i32) {
    %c0_i32 = arith.constant 0 : i32
    %c0_i32_0 = arith.constant 0 : i32
    %c0_i32_1 = arith.constant 0 : i32
    return %c0_i32, %c0_i32_0 : i32, i32
  }
  func.func @transform_13(%arg0: i32) -> (i32, i32) {
    %c0_i32 = arith.constant 0 : i32
    %c0_i32_0 = arith.constant 0 : i32
    %c0_i32_1 = arith.constant 0 : i32
    return %c0_i32, %c0_i32_0 : i32, i32
  }
  func.func @transform_14(%arg0: i32) -> (i32, i32) {
    %c0_i32 = arith.constant 0 : i32
    %c0_i32_0 = arith.constant 0 : i32
    %c0_i32_1 = arith.constant 0 : i32
    return %c0_i32, %c0_i32_0 : i32, i32
  }
  func.func @transform_15(%arg0: i32) -> (i32, i32) {
    %c0_i32 = arith.constant 0 : i32
    %c0_i32_0 = arith.constant 0 : i32
    %c0_i32_1 = arith.constant 0 : i32
    return %c0_i32, %c0_i32_0 : i32, i32
  }
  func.func @transform_16(%arg0: i32) -> (i32, i32) {
    %c0_i32 = arith.constant 0 : i32
    %c0_i32_0 = arith.constant 0 : i32
    %c0_i32_1 = arith.constant 0 : i32
    return %c0_i32, %c0_i32_0 : i32, i32
  }
  func.func @transform_17(%arg0: i32) -> (i32, i32, i32) {
    %c0_i32 = arith.constant 0 : i32
    %c0_i32_0 = arith.constant 0 : i32
    %c0_i32_1 = arith.constant 0 : i32
    return %arg0, %c0_i32, %c0_i32_0 : i32, i32, i32
  }
}

</mosaic_0001>

<llo_original>
// kernel: tpu_custom_call.1
$region0: #{tpu_custom_call.1}
  #allocation0 [shape = 'u32[]', space=smem, size = 0x4, offset = 0x4, fixed_abs, tag = 'smem constant byte address 0x4 - core index']
  #allocation1 [shape = 'u32[72,128]{1,0:T(1,128)}', space=vmem, size = 0x9000, scoped, tag = 'internal scratch']
  %s0 = inlined_call_operand.vmem [shape: f32[1,64,128], index: 0, kind: input, shape index: {}]
  %s1 = inlined_call_operand.hbm [shape: bf16[128,640], index: 1, kind: input, shape index: {}]
  %s2 = inlined_call_operand.hbm [shape: f32[64,320], index: 2, kind: input, shape index: {}]
  %s3 = inlined_call_operand.vmem [shape: f32[1,128], index: 3, kind: input, shape index: {}]
  %s4 = inlined_call_operand.hbm [shape: f32[1,128], index: 4, kind: input, shape index: {}]
  %s5 = inlined_call_operand.hbm [shape: bf16[128,384], index: 5, kind: input, shape index: {}]
  %s6 = inlined_call_operand.vmem [shape: f32[32,192], index: 6, kind: input, shape index: {}]
  %s7 = inlined_call_operand.vmem [shape: f32[1,128], index: 7, kind: input, shape index: {}]
  %s8 = inlined_call_operand.hbm [shape: bf16[128,384], index: 8, kind: input, shape index: {}]
  %s9 = inlined_call_operand.vmem [shape: f32[16,96], index: 9, kind: input, shape index: {}]
  %s10 = inlined_call_operand.vmem [shape: f32[1,128], index: 10, kind: input, shape index: {}]
  %s11 = inlined_call_operand.vmem [shape: f32[1,128], index: 11, kind: input, shape index: {}]
  %s12 = inlined_call_operand.hbm [shape: bf16[128,128], index: 12, kind: input, shape index: {}]
  %s13 = inlined_call_operand.hbm [shape: f32[16,128], index: 13, kind: input, shape index: {}]
  %s14 = inlined_call_operand.vmem [shape: f32[2,16], index: 14, kind: input, shape index: {}]
  %s15 = inlined_call_operand.vmem [shape: f32[128,10], index: 15, kind: input, shape index: {}]
  %s16 = inlined_call_operand.vmem [shape: f32[1,10], index: 16, kind: input, shape index: {}]
  %s17 = inlined_call_operand.hbm [shape: f32[1,2,10], index: 17, kind: output, shape index: {}]
  %s18 = sld [smem:[#allocation0]]
  $region106: #{tpu_custom_call.1} parent=0
    _
  %s20 = ssub.s32 1, %s18
  %s21 = scalar_select 0, %s20, %s18
  $region1: #{tpu_custom_call.1} parent=0
    #allocation2 [shape = 'u8[163840]{0}', space=vmem, size = 0x28000, scoped, tag = 'input window, operand 1, single buffered']
    #allocation3 [shape = 's32[1]{0}', space=sflag, size = 0x4, scoped, tag = 'scoped memory for tpu_custom_call.1']
    #allocation4 [shape = 's32[1]{0}', space=sflag, size = 0x4, scoped, tag = 'scoped memory for tpu_custom_call.1']
    #allocation5 [shape = 'u8[98304]{0}', space=vmem, size = 0x18000, scoped, tag = 'input window, operand 2, single buffered']
    #allocation6 [shape = 's32[1]{0}', space=sflag, size = 0x4, scoped, tag = 'scoped memory for tpu_custom_call.1']
    #allocation7 [shape = 'u8[512]{0}', space=vmem, size = 0x400, scoped, tag = 'input window, operand 4, single buffered']
    #allocation8 [shape = 'u8[98304]{0}', space=vmem, size = 0x18000, scoped, tag = 'input window, operand 5, single buffered']
    #allocation9 [shape = 's32[1]{0}', space=sflag, size = 0x4, scoped, tag = 'scoped memory for tpu_custom_call.1']
    #allocation10 [shape = 'u8[98304]{0}', space=vmem, size = 0x18000, scoped, tag = 'input window, operand 8, single buffered']
    #allocation11 [shape = 'u8[32768]{0}', space=vmem, size = 0x8000, scoped, tag = 'input window, operand 12, single buffered']
    #allocation12 [shape = 's32[1]{0}', space=sflag, size = 0x4, scoped, tag = 'scoped memory for tpu_custom_call.1']
    #allocation13 [shape = 'u8[8192]{0}', space=vmem, size = 0x2000, scoped, tag = 'input window, operand 13, single buffered']
    #allocation14 [shape = 'u8[1024]{0}', space=vmem, size = 0x400, scoped, tag = 'output window, operand 0, single buffered']
    %22 = vsyncpa [#allocation3], 0
    %23 = vsyncpa [#allocation6], 0
    %24 = vsyncpa [#allocation9], 0
    %25 = vsyncpa [#allocation12], 0
    %26 = vsyncpa [#allocation4], 0
    // Predicated region
    $region2: #{tpu_custom_call.1} parent=1 // pred_check
      _
    $region3: #{tpu_custom_call.1} parent=1 // pred_check_branch
      %28 = sbr.rel (0) target = $region5
    $region4: #{tpu_custom_call.1} parent=1 // pred_region
      _
    $region5: #{tpu_custom_call.1} parent=1 // pred_fallthru
      _
    // Predicated region
    $region6: #{tpu_custom_call.1} parent=1 // pred_check
      _
    $region7: #{tpu_custom_call.1} parent=1 // pred_check_branch
      %30 = sbr.rel (0) target = $region9
    $region8: #{tpu_custom_call.1} parent=1 // pred_region
      %32 = vsyncadd [#allocation3], 0
      %s33 = sshll.u32 %s1, 4
      %s34 = int_to_ptr.hbm [resolvable:$true] %s33
      %s35 = sshll.u32 [#allocation2], 4
      %s36 = int_to_ptr.vmem [resolvable:$true] %s35
      %41 = dma.hbm_to_vmem [thread:$0]  %s34, 5120, %s36, [#allocation3], 320, 320, 20
    $region9: #{tpu_custom_call.1} parent=1 // pred_fallthru
      _
    // Predicated region
    $region10: #{tpu_custom_call.1} parent=1 // pred_check
      _
    $region11: #{tpu_custom_call.1} parent=1 // pred_check_branch
      %43 = sbr.rel (0) target = $region13
    $region12: #{tpu_custom_call.1} parent=1 // pred_region
      %45 = vsyncadd [#allocation6], 0
      %s46 = sshll.u32 %s2, 4
      %s47 = int_to_ptr.hbm [resolvable:$true] %s46
      %s48 = sshll.u32 [#allocation5], 4
      %s49 = int_to_ptr.vmem [resolvable:$true] %s48
      %54 = dma.hbm_to_vmem [thread:$0]  %s47, 3072, %s49, [#allocation6], 384, 384, 24
    $region13: #{tpu_custom_call.1} parent=1 // pred_fallthru
      _
    // Predicated region
    $region14: #{tpu_custom_call.1} parent=1 // pred_check
      _
    $region15: #{tpu_custom_call.1} parent=1 // pred_check_branch
      %56 = sbr.rel (0) target = $region17
    $region16: #{tpu_custom_call.1} parent=1 // pred_region
      _
    $region17: #{tpu_custom_call.1} parent=1 // pred_fallthru
      _
    // Predicated region
    $region18: #{tpu_custom_call.1} parent=1 // pred_check
      _
    $region19: #{tpu_custom_call.1} parent=1 // pred_check_branch
      %58 = sbr.rel (0) target = $region21
    $region20: #{tpu_custom_call.1} parent=1 // pred_region
      %60 = vsyncadd [#allocation6], 0
      %s62 = sshll.u32 %s4, 4
      %s63 = int_to_ptr.hbm [resolvable:$true] %s62
      %s64 = sshll.u32 [#allocation7], 4
      %s65 = int_to_ptr.vmem [resolvable:$true] %s64
      %67 = dma.hbm_to_vmem [thread:$0]  %s63, 16, %s65, [#allocation6]
    $region21: #{tpu_custom_call.1} parent=1 // pred_fallthru
      _
    // Predicated region
    $region22: #{tpu_custom_call.1} parent=1 // pred_check
      _
    $region23: #{tpu_custom_call.1} parent=1 // pred_check_branch
      %69 = sbr.rel (0) target = $region25
    $region24: #{tpu_custom_call.1} parent=1 // pred_region
      %71 = vsyncadd [#allocation9], 0
      %s72 = sshll.u32 %s5, 4
      %s73 = int_to_ptr.hbm [resolvable:$true] %s72
      %s74 = sshll.u32 [#allocation8], 4
      %s75 = int_to_ptr.vmem [resolvable:$true] %s74
      %80 = dma.hbm_to_vmem [thread:$0]  %s73, 3072, %s75, [#allocation9], 192, 192, 12
    $region25: #{tpu_custom_call.1} parent=1 // pred_fallthru
      _
    // Predicated region
    $region26: #{tpu_custom_call.1} parent=1 // pred_check
      _
    $region27: #{tpu_custom_call.1} parent=1 // pred_check_branch
      %82 = sbr.rel (0) target = $region29
    $region28: #{tpu_custom_call.1} parent=1 // pred_region
      _
    $region29: #{tpu_custom_call.1} parent=1 // pred_fallthru
      _
    // Predicated region
    $region30: #{tpu_custom_call.1} parent=1 // pred_check
      _
    $region31: #{tpu_custom_call.1} parent=1 // pred_check_branch
      %84 = sbr.rel (0) target = $region33
    $region32: #{tpu_custom_call.1} parent=1 // pred_region
      _
    $region33: #{tpu_custom_call.1} parent=1 // pred_fallthru
      _
    // Predicated region
    $region34: #{tpu_custom_call.1} parent=1 // pred_check
      _
    $region35: #{tpu_custom_call.1} parent=1 // pred_check_branch
      %86 = sbr.rel (0) target = $region37
    $region36: #{tpu_custom_call.1} parent=1 // pred_region
      %88 = vsyncadd [#allocation9], 0
      %s89 = sshll.u32 %s8, 4
      %s90 = int_to_ptr.hbm [resolvable:$true] %s89
      %s91 = sshll.u32 [#allocation10], 4
      %s92 = int_to_ptr.vmem [resolvable:$true] %s91
      %97 = dma.hbm_to_vmem [thread:$0]  %s90, 3072, %s92, [#allocation9], 192, 192, 12
    $region37: #{tpu_custom_call.1} parent=1 // pred_fallthru
      _
    // Predicated region
    $region38: #{tpu_custom_call.1} parent=1 // pred_check
      _
    $region39: #{tpu_custom_call.1} parent=1 // pred_check_branch
      %99 = sbr.rel (0) target = $region41
    $region40: #{tpu_custom_call.1} parent=1 // pred_region
      _
    $region41: #{tpu_custom_call.1} parent=1 // pred_fallthru
      _
    // Predicated region
    $region42: #{tpu_custom_call.1} parent=1 // pred_check
      _
    $region43: #{tpu_custom_call.1} parent=1 // pred_check_branch
      %101 = sbr.rel (0) target = $region45
    $region44: #{tpu_custom_call.1} parent=1 // pred_region
      _
    $region45: #{tpu_custom_call.1} parent=1 // pred_fallthru
      _
    // Predicated region
    $region46: #{tpu_custom_call.1} parent=1 // pred_check
      _
    $region47: #{tpu_custom_call.1} parent=1 // pred_check_branch
      %103 = sbr.rel (0) target = $region49
    $region48: #{tpu_custom_call.1} parent=1 // pred_region
      _
    $region49: #{tpu_custom_call.1} parent=1 // pred_fallthru
      _
    // Predicated region
    $region50: #{tpu_custom_call.1} parent=1 // pred_check
      _
    $region51: #{tpu_custom_call.1} parent=1 // pred_check_branch
      %105 = sbr.rel (0) target = $region53
    $region52: #{tpu_custom_call.1} parent=1 // pred_region
      %107 = vsyncadd [#allocation12], 0
      %s108 = sshll.u32 %s12, 4
      %s109 = int_to_ptr.hbm [resolvable:$true] %s108
      %s110 = sshll.u32 [#allocation11], 4
      %s111 = int_to_ptr.vmem [resolvable:$true] %s110
      %116 = dma.hbm_to_vmem [thread:$0]  %s109, 1024, %s111, [#allocation12], 64, 64, 4
    $region53: #{tpu_custom_call.1} parent=1 // pred_fallthru
      _
    // Predicated region
    $region54: #{tpu_custom_call.1} parent=1 // pred_check
      _
    $region55: #{tpu_custom_call.1} parent=1 // pred_check_branch
      %118 = sbr.rel (0) target = $region57
    $region56: #{tpu_custom_call.1} parent=1 // pred_region
      %120 = vsyncadd [#allocation12], 0
      %s121 = sshll.u32 %s13, 4
      %s122 = int_to_ptr.hbm [resolvable:$true] %s121
      %s123 = sshll.u32 [#allocation13], 4
      %s124 = int_to_ptr.vmem [resolvable:$true] %s123
      %129 = dma.hbm_to_vmem [thread:$0]  %s122, 256, %s124, [#allocation12], 128, 128, 8
    $region57: #{tpu_custom_call.1} parent=1 // pred_fallthru
      _
    // Predicated region
    $region58: #{tpu_custom_call.1} parent=1 // pred_check
      _
    $region59: #{tpu_custom_call.1} parent=1 // pred_check_branch
      %131 = sbr.rel (0) target = $region61
    $region60: #{tpu_custom_call.1} parent=1 // pred_region
      _
    $region61: #{tpu_custom_call.1} parent=1 // pred_fallthru
      _
    // Predicated region
    $region62: #{tpu_custom_call.1} parent=1 // pred_check
      _
    $region63: #{tpu_custom_call.1} parent=1 // pred_check_branch
      %133 = sbr.rel (0) target = $region65
    $region64: #{tpu_custom_call.1} parent=1 // pred_region
      _
    $region65: #{tpu_custom_call.1} parent=1 // pred_fallthru
      _
    // Predicated region
    $region66: #{tpu_custom_call.1} parent=1 // pred_check
      _
    $region67: #{tpu_custom_call.1} parent=1 // pred_check_branch
      %135 = sbr.rel (0) target = $region69
    $region68: #{tpu_custom_call.1} parent=1 // pred_region
      _
    $region69: #{tpu_custom_call.1} parent=1 // pred_fallthru
      _
    // Predicated region
    $region70: #{tpu_custom_call.1} parent=1 // pred_check
      _
    $region71: #{tpu_custom_call.1} parent=1 // pred_check_branch
      %137 = sbr.rel (0) target = $region73
    $region72: #{tpu_custom_call.1} parent=1 // pred_region
      %139 = dma.done [#allocation3], 5120
    $region73: #{tpu_custom_call.1} parent=1 // pred_fallthru
      _
    // Predicated region
    $region74: #{tpu_custom_call.1} parent=1 // pred_check
      _
    $region75: #{tpu_custom_call.1} parent=1 // pred_check_branch
      %141 = sbr.rel (0) target = $region77
    $region76: #{tpu_custom_call.1} parent=1 // pred_region
      %143 = dma.done [#allocation6], 3072
    $region77: #{tpu_custom_call.1} parent=1 // pred_fallthru
      _
    // Predicated region
    $region78: #{tpu_custom_call.1} parent=1 // pred_check
      _
    $region79: #{tpu_custom_call.1} parent=1 // pred_check_branch
      %145 = sbr.rel (0) target = $region81
    $region80: #{tpu_custom_call.1} parent=1 // pred_region
      %147 = dma.done [#allocation6], 16
    $region81: #{tpu_custom_call.1} parent=1 // pred_fallthru
      _
    // Predicated region
    $region82: #{tpu_custom_call.1} parent=1 // pred_check
      _
    $region83: #{tpu_custom_call.1} parent=1 // pred_check_branch
      %149 = sbr.rel (0) target = $region85
    $region84: #{tpu_custom_call.1} parent=1 // pred_region
      %151 = dma.done [#allocation9], 3072
    $region85: #{tpu_custom_call.1} parent=1 // pred_fallthru
      _
    // Predicated region
    $region86: #{tpu_custom_call.1} parent=1 // pred_check
      _
    $region87: #{tpu_custom_call.1} parent=1 // pred_check_branch
      %153 = sbr.rel (0) target = $region89
    $region88: #{tpu_custom_call.1} parent=1 // pred_region
      %155 = dma.done [#allocation9], 3072
    $region89: #{tpu_custom_call.1} parent=1 // pred_fallthru
      _
    // Predicated region
    $region90: #{tpu_custom_call.1} parent=1 // pred_check
      _
    $region91: #{tpu_custom_call.1} parent=1 // pred_check_branch
      %157 = sbr.rel (0) target = $region93
    $region92: #{tpu_custom_call.1} parent=1 // pred_region
      %159 = dma.done [#allocation12], 1024
    $region93: #{tpu_custom_call.1} parent=1 // pred_fallthru
      _
    // Predicated region
    $region94: #{tpu_custom_call.1} parent=1 // pred_check
      _
    $region95: #{tpu_custom_call.1} parent=1 // pred_check_branch
      %161 = sbr.rel (0) target = $region97
    $region96: #{tpu_custom_call.1} parent=1 // pred_region
      %163 = dma.done [#allocation12], 256
    $region97: #{tpu_custom_call.1} parent=1 // pred_fallthru
      _
    %v164 = vld [vmem:[%s0] sm:$0xff]
    %v165 = vld [vmem:[%s0 + $0x8] sm:$0xff]
    %v166 = vld [vmem:[%s0 + $0x10] sm:$0xff]
    %v167 = vld [vmem:[%s0 + $0x18] sm:$0xff]
    %v168 = vld [vmem:[%s0 + $0x20] sm:$0xff]
    %v169 = vld [vmem:[%s0 + $0x28] sm:$0xff]
    %v170 = vld [vmem:[%s0 + $0x30] sm:$0xff]
    %v171 = vld [vmem:[%s0 + $0x38] sm:$0xff]
    %v172 = vpack.c.bf16 %v165, %v164
    %v173 = vpack.c.bf16 %v167, %v166
    %v174 = vpack.c.bf16 %v169, %v168
    %v175 = vpack.c.bf16 %v171, %v170
    %v176 = vld [vmem:[#allocation2] sm:$0xff]
    %v177 = vld [vmem:[#allocation2 + $0x8] sm:$0xff]
    %v178 = vld [vmem:[#allocation2 + $0x10] sm:$0xf]
    %v179 = vld [vmem:[#allocation2 + $0x14] sm:$0xff]
    %v180 = vld [vmem:[#allocation2 + $0x1c] sm:$0xff]
    %v181 = vld [vmem:[#allocation2 + $0x24] sm:$0xf]
    %v182 = vld [vmem:[#allocation2 + $0x28] sm:$0xff]
    %v183 = vld [vmem:[#allocation2 + $0x30] sm:$0xff]
    %v184 = vld [vmem:[#allocation2 + $0x38] sm:$0xf]
    %v185 = vld [vmem:[#allocation2 + $0x3c] sm:$0xff]
    %v186 = vld [vmem:[#allocation2 + $0x44] sm:$0xff]
    %v187 = vld [vmem:[#allocation2 + $0x4c] sm:$0xf]
    %v188 = vld [vmem:[#allocation2 + $0x50] sm:$0xff]
    %v189 = vld [vmem:[#allocation2 + $0x58] sm:$0xff]
    %v190 = vld [vmem:[#allocation2 + $0x60] sm:$0xf]
    %v191 = vld [vmem:[#allocation2 + $0x64] sm:$0xff]
    %v192 = vld [vmem:[#allocation2 + $0x6c] sm:$0xff]
    %v193 = vld [vmem:[#allocation2 + $0x74] sm:$0xf]
    %v194 = vld [vmem:[#allocation2 + $0x78] sm:$0xff]
    %v195 = vld [vmem:[#allocation2 + $0x80] sm:$0xff]
    %v196 = vld [vmem:[#allocation2 + $0x88] sm:$0xf]
    %v197 = vld [vmem:[#allocation2 + $0x8c] sm:$0xff]
    %v198 = vld [vmem:[#allocation2 + $0x94] sm:$0xff]
    %v199 = vld [vmem:[#allocation2 + $0x9c] sm:$0xf]
    %v200 = vld [vmem:[#allocation2 + $0xa0] sm:$0xff]
    %v201 = vld [vmem:[#allocation2 + $0xa8] sm:$0xff]
    %v202 = vld [vmem:[#allocation2 + $0xb0] sm:$0xf]
    %v203 = vld [vmem:[#allocation2 + $0xb4] sm:$0xff]
    %v204 = vld [vmem:[#allocation2 + $0xbc] sm:$0xff]
    %v205 = vld [vmem:[#allocation2 + $0xc4] sm:$0xf]
    %v206 = vld [vmem:[#allocation2 + $0xc8] sm:$0xff]
    %v207 = vld [vmem:[#allocation2 + $0xd0] sm:$0xff]
    %v208 = vld [vmem:[#allocation2 + $0xd8] sm:$0xf]
    %v209 = vld [vmem:[#allocation2 + $0xdc] sm:$0xff]
    %v210 = vld [vmem:[#allocation2 + $0xe4] sm:$0xff]
    %v211 = vld [vmem:[#allocation2 + $0xec] sm:$0xf]
    %v212 = vld [vmem:[#allocation2 + $0xf0] sm:$0xff]
    %v213 = vld [vmem:[#allocation2 + $0xf8] sm:$0xff]
    %v214 = vld [vmem:[#allocation2 + $0x100] sm:$0xf]
    %v215 = vld [vmem:[#allocation2 + $0x104] sm:$0xff]
    %v216 = vld [vmem:[#allocation2 + $0x10c] sm:$0xff]
    %v217 = vld [vmem:[#allocation2 + $0x114] sm:$0xf]
    %v218 = vld [vmem:[#allocation2 + $0x118] sm:$0xff]
    %v219 = vld [vmem:[#allocation2 + $0x120] sm:$0xff]
    %v220 = vld [vmem:[#allocation2 + $0x128] sm:$0xf]
    %v221 = vld [vmem:[#allocation2 + $0x12c] sm:$0xff]
    %v222 = vld [vmem:[#allocation2 + $0x134] sm:$0xff]
    %v223 = vld [vmem:[#allocation2 + $0x13c] sm:$0xf]
    %v272 = vunpack.c.l.b16 %v176
    %v273 = vunpack.c.h.b16 %v176
    %v274 = vunpack.c.l.b16 %v177
    %v275 = vunpack.c.h.b16 %v177
    %v276 = vunpack.c.l.b16 %v178
    %v277 = vunpack.c.l.b16 %v179
    %v278 = vunpack.c.h.b16 %v179
    %v279 = vunpack.c.l.b16 %v180
    %v280 = vunpack.c.h.b16 %v180
    %v281 = vunpack.c.l.b16 %v181
    %v282 = vunpack.c.l.b16 %v182
    %v283 = vunpack.c.h.b16 %v182
    %v284 = vunpack.c.l.b16 %v183
    %v285 = vunpack.c.h.b16 %v183
    %v286 = vunpack.c.l.b16 %v184
    %v287 = vunpack.c.l.b16 %v185
    %v288 = vunpack.c.h.b16 %v185
    %v289 = vunpack.c.l.b16 %v186
    %v290 = vunpack.c.h.b16 %v186
    %v291 = vunpack.c.l.b16 %v187
    %v292 = vunpack.c.l.b16 %v188
    %v293 = vunpack.c.h.b16 %v188
    %v294 = vunpack.c.l.b16 %v189
    %v295 = vunpack.c.h.b16 %v189
    %v296 = vunpack.c.l.b16 %v190
    %v297 = vunpack.c.l.b16 %v191
    %v298 = vunpack.c.h.b16 %v191
    %v299 = vunpack.c.l.b16 %v192
    %v300 = vunpack.c.h.b16 %v192
    %v301 = vunpack.c.l.b16 %v193
    %v302 = vunpack.c.l.b16 %v194
    %v303 = vunpack.c.h.b16 %v194
    %v304 = vunpack.c.l.b16 %v195
    %v305 = vunpack.c.h.b16 %v195
    %v306 = vunpack.c.l.b16 %v196
    %v307 = vunpack.c.l.b16 %v197
    %v308 = vunpack.c.h.b16 %v197
    %v309 = vunpack.c.l.b16 %v198
    %v310 = vunpack.c.h.b16 %v198
    %v311 = vunpack.c.l.b16 %v199
    %v312 = vunpack.c.l.b16 %v200
    %v313 = vunpack.c.h.b16 %v200
    %v314 = vunpack.c.l.b16 %v201
    %v315 = vunpack.c.h.b16 %v201
    %v316 = vunpack.c.l.b16 %v202
    %v317 = vunpack.c.l.b16 %v203
    %v318 = vunpack.c.h.b16 %v203
    %v319 = vunpack.c.l.b16 %v204
    %v320 = vunpack.c.h.b16 %v204
    %v321 = vunpack.c.l.b16 %v205
    %v322 = vunpack.c.l.b16 %v206
    %v323 = vunpack.c.h.b16 %v206
    %v324 = vunpack.c.l.b16 %v207
    %v325 = vunpack.c.h.b16 %v207
    %v326 = vunpack.c.l.b16 %v208
    %v327 = vunpack.c.l.b16 %v209
    %v328 = vunpack.c.h.b16 %v209
    %v329 = vunpack.c.l.b16 %v210
    %v330 = vunpack.c.h.b16 %v210
    %v331 = vunpack.c.l.b16 %v211
    %v332 = vunpack.c.l.b16 %v212
    %v333 = vunpack.c.h.b16 %v212
    %v334 = vunpack.c.l.b16 %v213
    %v335 = vunpack.c.h.b16 %v213
    %v336 = vunpack.c.l.b16 %v214
    %v337 = vunpack.c.l.b16 %v215
    %v338 = vunpack.c.h.b16 %v215
    %v339 = vunpack.c.l.b16 %v216
    %v340 = vunpack.c.h.b16 %v216
    %v341 = vunpack.c.l.b16 %v217
    %v342 = vunpack.c.l.b16 %v218
    %v343 = vunpack.c.h.b16 %v218
    %v344 = vunpack.c.l.b16 %v219
    %v345 = vunpack.c.h.b16 %v219
    %v346 = vunpack.c.l.b16 %v220
    %v347 = vunpack.c.l.b16 %v221
    %v348 = vunpack.c.h.b16 %v221
    %v349 = vunpack.c.l.b16 %v222
    %v350 = vunpack.c.h.b16 %v222
    %v351 = vunpack.c.l.b16 %v223
    %v352 = vpack.c.b16 %v277, %v272
    %v353 = vpack.c.b16 %v278, %v273
    %v354 = vpack.c.b16 %v279, %v274
    %v355 = vpack.c.b16 %v280, %v275
    %v356 = vpack.c.b16 %v281, %v276
    %v357 = vpack.c.b16 %v287, %v282
    %v358 = vpack.c.b16 %v288, %v283
    %v359 = vpack.c.b16 %v289, %v284
    %v360 = vpack.c.b16 %v290, %v285
    %v361 = vpack.c.b16 %v291, %v286
    %v362 = vpack.c.b16 %v297, %v292
    %v363 = vpack.c.b16 %v298, %v293
    %v364 = vpack.c.b16 %v299, %v294
    %v365 = vpack.c.b16 %v300, %v295
    %v366 = vpack.c.b16 %v301, %v296
    %v367 = vpack.c.b16 %v307, %v302
    %v368 = vpack.c.b16 %v308, %v303
    %v369 = vpack.c.b16 %v309, %v304
    %v370 = vpack.c.b16 %v310, %v305
    %v371 = vpack.c.b16 %v311, %v306
    %v372 = vpack.c.b16 %v317, %v312
    %v373 = vpack.c.b16 %v318, %v313
    %v374 = vpack.c.b16 %v319, %v314
    %v375 = vpack.c.b16 %v320, %v315
    %v376 = vpack.c.b16 %v321, %v316
    %v377 = vpack.c.b16 %v327, %v322
    %v378 = vpack.c.b16 %v328, %v323
    %v379 = vpack.c.b16 %v329, %v324
    %v380 = vpack.c.b16 %v330, %v325
    %v381 = vpack.c.b16 %v331, %v326
    %v382 = vpack.c.b16 %v337, %v332
    %v383 = vpack.c.b16 %v338, %v333
    %v384 = vpack.c.b16 %v339, %v334
    %v385 = vpack.c.b16 %v340, %v335
    %v386 = vpack.c.b16 %v341, %v336
    %v387 = vpack.c.b16 %v347, %v342
    %v388 = vpack.c.b16 %v348, %v343
    %v389 = vpack.c.b16 %v349, %v344
    %v390 = vpack.c.b16 %v350, %v345
    %v391 = vpack.c.b16 %v351, %v346
    %432 = vmatpush.bf16.msra.mxu0 %v387
    %433 = vmatpush.bf16.msra.mxu0 %v382
    %434 = vmatpush.bf16.msra.mxu0 %v377
    %435 = vmatpush.bf16.msra.mxu0 %v372
    %436 = vmatpush.bf16.msra.mxu0 %v367
    %437 = vmatpush.bf16.msra.mxu0 %v362
    %438 = vmatpush.bf16.msra.mxu0 %v357
    %439 = vmatpush.bf16.msra.mxu0 %v352
    %440 = vmatmul.bf16.gmra.mxu0 %v172
    %v441 = vpop.f32.mrf.mxu0
    %v442 = vadd.f32 0.0, %v441
    %v443 = vpop.f32.mrf.mxu0
    %v444 = vadd.f32 0.0, %v443
    %445 = vmatmul.bf16.gmra.mxu0 %v173
    %v446 = vpop.f32.mrf.mxu0
    %v447 = vadd.f32 0.0, %v446
    %v448 = vpop.f32.mrf.mxu0
    %v449 = vadd.f32 0.0, %v448
    %450 = vmatmul.bf16.gmra.mxu0 %v174
    %v451 = vpop.f32.mrf.mxu0
    %v452 = vadd.f32 0.0, %v451
    %v453 = vpop.f32.mrf.mxu0
    %v454 = vadd.f32 0.0, %v453
    %455 = vmatmul.bf16.gmra.mxu0 %v175
    %v456 = vpop.f32.mrf.mxu0
    %v457 = vadd.f32 0.0, %v456
    %v458 = vpop.f32.mrf.mxu0
    %v459 = vadd.f32 0.0, %v458
    %460 = vdwg.mxu0
    %461 = vmatpush.bf16.msra.mxu0 %v388
    %462 = vmatpush.bf16.msra.mxu0 %v383
    %463 = vmatpush.bf16.msra.mxu0 %v378
    %464 = vmatpush.bf16.msra.mxu0 %v373
    %465 = vmatpush.bf16.msra.mxu0 %v368
    %466 = vmatpush.bf16.msra.mxu0 %v363
    %467 = vmatpush.bf16.msra.mxu0 %v358
    %468 = vmatpush.bf16.msra.mxu0 %v353
    %469 = vmatmul.bf16.gmra.mxu0 %v172
    %v470 = vpop.f32.mrf.mxu0
    %v471 = vadd.f32 0.0, %v470
    %v472 = vpop.f32.mrf.mxu0
    %v473 = vadd.f32 0.0, %v472
    %474 = vmatmul.bf16.gmra.mxu0 %v173
    %v475 = vpop.f32.mrf.mxu0
    %v476 = vadd.f32 0.0, %v475
    %v477 = vpop.f32.mrf.mxu0
    %v478 = vadd.f32 0.0, %v477
    %479 = vmatmul.bf16.gmra.mxu0 %v174
    %v480 = vpop.f32.mrf.mxu0
    %v481 = vadd.f32 0.0, %v480
    %v482 = vpop.f32.mrf.mxu0
    %v483 = vadd.f32 0.0, %v482
    %484 = vmatmul.bf16.gmra.mxu0 %v175
    %v485 = vpop.f32.mrf.mxu0
    %v486 = vadd.f32 0.0, %v485
    %v487 = vpop.f32.mrf.mxu0
    %v488 = vadd.f32 0.0, %v487
    %489 = vdwg.mxu0
    %490 = vmatpush.bf16.msra.mxu0 %v389
    %491 = vmatpush.bf16.msra.mxu0 %v384
    %492 = vmatpush.bf16.msra.mxu0 %v379
    %493 = vmatpush.bf16.msra.mxu0 %v374
    %494 = vmatpush.bf16.msra.mxu0 %v369
    %495 = vmatpush.bf16.msra.mxu0 %v364
    %496 = vmatpush.bf16.msra.mxu0 %v359
    %497 = vmatpush.bf16.msra.mxu0 %v354
    %498 = vmatmul.bf16.gmra.mxu0 %v172
    %v499 = vpop.f32.mrf.mxu0
    %v500 = vadd.f32 0.0, %v499
    %v501 = vpop.f32.mrf.mxu0
    %v502 = vadd.f32 0.0, %v501
    %503 = vmatmul.bf16.gmra.mxu0 %v173
    %v504 = vpop.f32.mrf.mxu0
    %v505 = vadd.f32 0.0, %v504
    %v506 = vpop.f32.mrf.mxu0
    %v507 = vadd.f32 0.0, %v506
    %508 = vmatmul.bf16.gmra.mxu0 %v174
    %v509 = vpop.f32.mrf.mxu0
    %v510 = vadd.f32 0.0, %v509
    %v511 = vpop.f32.mrf.mxu0
    %v512 = vadd.f32 0.0, %v511
    %513 = vmatmul.bf16.gmra.mxu0 %v175
    %v514 = vpop.f32.mrf.mxu0
    %v515 = vadd.f32 0.0, %v514
    %v516 = vpop.f32.mrf.mxu0
    %v517 = vadd.f32 0.0, %v516
    %518 = vdwg.mxu0
    %519 = vmatpush.bf16.msra.mxu0 %v390
    %520 = vmatpush.bf16.msra.mxu0 %v385
    %521 = vmatpush.bf16.msra.mxu0 %v380
    %522 = vmatpush.bf16.msra.mxu0 %v375
    %523 = vmatpush.bf16.msra.mxu0 %v370
    %524 = vmatpush.bf16.msra.mxu0 %v365
    %525 = vmatpush.bf16.msra.mxu0 %v360
    %526 = vmatpush.bf16.msra.mxu0 %v355
    %527 = vmatmul.bf16.gmra.mxu0 %v172
    %v528 = vpop.f32.mrf.mxu0
    %v529 = vadd.f32 0.0, %v528
    %v530 = vpop.f32.mrf.mxu0
    %v531 = vadd.f32 0.0, %v530
    %532 = vmatmul.bf16.gmra.mxu0 %v173
    %v533 = vpop.f32.mrf.mxu0
    %v534 = vadd.f32 0.0, %v533
    %v535 = vpop.f32.mrf.mxu0
    %v536 = vadd.f32 0.0, %v535
    %537 = vmatmul.bf16.gmra.mxu0 %v174
    %v538 = vpop.f32.mrf.mxu0
    %v539 = vadd.f32 0.0, %v538
    %v540 = vpop.f32.mrf.mxu0
    %v541 = vadd.f32 0.0, %v540
    %542 = vmatmul.bf16.gmra.mxu0 %v175
    %v543 = vpop.f32.mrf.mxu0
    %v544 = vadd.f32 0.0, %v543
    %v545 = vpop.f32.mrf.mxu0
    %v546 = vadd.f32 0.0, %v545
    %547 = vdwg.mxu0
    %548 = vmatpush.bf16.msra.mxu0 %v391
    %549 = vmatpush.bf16.msra.mxu0 %v386
    %550 = vmatpush.bf16.msra.mxu0 %v381
    %551 = vmatpush.bf16.msra.mxu0 %v376
    %552 = vmatpush.bf16.msra.mxu0 %v371
    %553 = vmatpush.bf16.msra.mxu0 %v366
    %554 = vmatpush.bf16.msra.mxu0 %v361
    %555 = vmatpush.bf16.msra.mxu0 %v356
    %556 = vmatmul.bf16.gmra.mxu0 %v172
    %v557 = vpop.f32.mrf.mxu0
    %v558 = vadd.f32 0.0, %v557
    %v559 = vpop.f32.mrf.mxu0
    %v560 = vadd.f32 0.0, %v559
    %561 = vmatmul.bf16.gmra.mxu0 %v173
    %v562 = vpop.f32.mrf.mxu0
    %v563 = vadd.f32 0.0, %v562
    %v564 = vpop.f32.mrf.mxu0
    %v565 = vadd.f32 0.0, %v564
    %566 = vmatmul.bf16.gmra.mxu0 %v174
    %v567 = vpop.f32.mrf.mxu0
    %v568 = vadd.f32 0.0, %v567
    %v569 = vpop.f32.mrf.mxu0
    %v570 = vadd.f32 0.0, %v569
    %571 = vmatmul.bf16.gmra.mxu0 %v175
    %v572 = vpop.f32.mrf.mxu0
    %v573 = vadd.f32 0.0, %v572
    %v574 = vpop.f32.mrf.mxu0
    %v575 = vadd.f32 0.0, %v574
    %576 = vdwg.mxu0
    %v577 = vld [vmem:[#allocation5] sm:$0xff]
    %v578 = vld [vmem:[#allocation5 + $0x8] sm:$0xff]
    %v579 = vld [vmem:[#allocation5 + $0x10] sm:$0xff]
    %v580 = vld [vmem:[#allocation5 + $0x18] sm:$0xff]
    %v581 = vld [vmem:[#allocation5 + $0x20] sm:$0xff]
    %v582 = vld [vmem:[#allocation5 + $0x28] sm:$0xff]
    %v583 = vld [vmem:[#allocation5 + $0x30] sm:$0xff]
    %v584 = vld [vmem:[#allocation5 + $0x38] sm:$0xff]
    %v585 = vld [vmem:[#allocation5 + $0x40] sm:$0xff]
    %v586 = vld [vmem:[#allocation5 + $0x48] sm:$0xff]
    %v587 = vld [vmem:[#allocation5 + $0x50] sm:$0xff]
    %v588 = vld [vmem:[#allocation5 + $0x58] sm:$0xff]
    %v589 = vld [vmem:[#allocation5 + $0x60] sm:$0xff]
    %v590 = vld [vmem:[#allocation5 + $0x68] sm:$0xff]
    %v591 = vld [vmem:[#allocation5 + $0x70] sm:$0xff]
    %v592 = vld [vmem:[#allocation5 + $0x78] sm:$0xff]
    %v593 = vld [vmem:[#allocation5 + $0x80] sm:$0xff]
    %v594 = vld [vmem:[#allocation5 + $0x88] sm:$0xff]
    %v595 = vld [vmem:[#allocation5 + $0x90] sm:$0xff]
    %v596 = vld [vmem:[#allocation5 + $0x98] sm:$0xff]
    %v597 = vld [vmem:[#allocation5 + $0xa0] sm:$0xff]
    %v598 = vld [vmem:[#allocation5 + $0xa8] sm:$0xff]
    %v599 = vld [vmem:[#allocation5 + $0xb0] sm:$0xff]
    %v600 = vld [vmem:[#allocation5 + $0xb8] sm:$0xff]
    %vm601 = vcmask 523264
    %v603 = vsel %vm601, %v579, 0
    %v606 = vsel %vm601, %v582, 0
    %v609 = vsel %vm601, %v585, 0
    %v612 = vsel %vm601, %v588, 0
    %v615 = vsel %vm601, %v591, 0
    %v618 = vsel %vm601, %v594, 0
    %v621 = vsel %vm601, %v597, 0
    %v624 = vsel %vm601, %v600, 0
    %626 = vmatpush.msra.mxu0 %v488
    %627 = vmatpush.msra.mxu0 %v486
    %628 = vmatpush.msra.mxu0 %v483
    %629 = vmatpush.msra.mxu0 %v481
    %630 = vmatpush.msra.mxu0 %v478
    %631 = vmatpush.msra.mxu0 %v476
    %632 = vmatpush.msra.mxu0 %v473
    %633 = vmatpush.msra.mxu0 %v471
    %634 = vmatpush.msra.mxu0 %v459
    %635 = vmatpush.msra.mxu0 %v457
    %636 = vmatpush.msra.mxu0 %v454
    %637 = vmatpush.msra.mxu0 %v452
    %638 = vmatpush.msra.mxu0 %v449
    %639 = vmatpush.msra.mxu0 %v447
    %640 = vmatpush.msra.mxu0 %v444
    %641 = vmatpush.msra.mxu0 %v442
    %642 = vmatmul.f32.gmra.mxu0 %v577
    %v643 = vpop.f32.mrf.mxu0
    %v644 = vadd.f32 0.0, %v643
    %645 = vmatmul.f32.gmra.mxu0 %v580
    %v646 = vpop.f32.mrf.mxu0
    %v647 = vadd.f32 0.0, %v646
    %648 = vmatmul.f32.gmra.mxu0 %v583
    %v649 = vpop.f32.mrf.mxu0
    %v650 = vadd.f32 0.0, %v649
    %651 = vmatmul.f32.gmra.mxu0 %v586
    %v652 = vpop.f32.mrf.mxu0
    %v653 = vadd.f32 0.0, %v652
    %654 = vmatmul.f32.gmra.mxu0 %v589
    %v655 = vpop.f32.mrf.mxu0
    %v656 = vadd.f32 0.0, %v655
    %657 = vmatmul.f32.gmra.mxu0 %v592
    %v658 = vpop.f32.mrf.mxu0
    %v659 = vadd.f32 0.0, %v658
    %660 = vmatmul.f32.gmra.mxu0 %v595
    %v661 = vpop.f32.mrf.mxu0
    %v662 = vadd.f32 0.0, %v661
    %663 = vmatmul.f32.gmra.mxu0 %v598
    %v664 = vpop.f32.mrf.mxu0
    %v665 = vadd.f32 0.0, %v664
    %666 = vdwg.mxu0
    %667 = vmatpush.msra.mxu0 %v546
    %668 = vmatpush.msra.mxu0 %v544
    %669 = vmatpush.msra.mxu0 %v541
    %670 = vmatpush.msra.mxu0 %v539
    %671 = vmatpush.msra.mxu0 %v536
    %672 = vmatpush.msra.mxu0 %v534
    %673 = vmatpush.msra.mxu0 %v531
    %674 = vmatpush.msra.mxu0 %v529
    %675 = vmatpush.msra.mxu0 %v517
    %676 = vmatpush.msra.mxu0 %v515
    %677 = vmatpush.msra.mxu0 %v512
    %678 = vmatpush.msra.mxu0 %v510
    %679 = vmatpush.msra.mxu0 %v507
    %680 = vmatpush.msra.mxu0 %v505
    %681 = vmatpush.msra.mxu0 %v502
    %682 = vmatpush.msra.mxu0 %v500
    %683 = vmatmul.f32.gmra.mxu0 %v578
    %v684 = vpop.f32.mrf.mxu0
    %v685 = vadd.f32 %v644, %v684
    %686 = vmatmul.f32.gmra.mxu0 %v581
    %v687 = vpop.f32.mrf.mxu0
    %v688 = vadd.f32 %v647, %v687
    %689 = vmatmul.f32.gmra.mxu0 %v584
    %v690 = vpop.f32.mrf.mxu0
    %v691 = vadd.f32 %v650, %v690
    %692 = vmatmul.f32.gmra.mxu0 %v587
    %v693 = vpop.f32.mrf.mxu0
    %v694 = vadd.f32 %v653, %v693
    %695 = vmatmul.f32.gmra.mxu0 %v590
    %v696 = vpop.f32.mrf.mxu0
    %v697 = vadd.f32 %v656, %v696
    %698 = vmatmul.f32.gmra.mxu0 %v593
    %v699 = vpop.f32.mrf.mxu0
    %v700 = vadd.f32 %v659, %v699
    %701 = vmatmul.f32.gmra.mxu0 %v596
    %v702 = vpop.f32.mrf.mxu0
    %v703 = vadd.f32 %v662, %v702
    %704 = vmatmul.f32.gmra.mxu0 %v599
    %v705 = vpop.f32.mrf.mxu0
    %v706 = vadd.f32 %v665, %v705
    %707 = vdwg.mxu0
    %708 = vmatpush.msra.mxu0 0.0
    %709 = vmatpush.msra.mxu0 0.0
    %710 = vmatpush.msra.mxu0 0.0
    %711 = vmatpush.msra.mxu0 0.0
    %712 = vmatpush.msra.mxu0 0.0
    %713 = vmatpush.msra.mxu0 0.0
    %714 = vmatpush.msra.mxu0 0.0
    %715 = vmatpush.msra.mxu0 0.0
    %716 = vmatpush.msra.mxu0 %v575
    %717 = vmatpush.msra.mxu0 %v573
    %718 = vmatpush.msra.mxu0 %v570
    %719 = vmatpush.msra.mxu0 %v568
    %720 = vmatpush.msra.mxu0 %v565
    %721 = vmatpush.msra.mxu0 %v563
    %722 = vmatpush.msra.mxu0 %v560
    %723 = vmatpush.msra.mxu0 %v558
    %724 = vmatmul.f32.gmra.mxu0 %v603
    %v725 = vpop.f32.mrf.mxu0
    %v726 = vadd.f32 %v685, %v725
    %727 = vmatmul.f32.gmra.mxu0 %v606
    %v728 = vpop.f32.mrf.mxu0
    %v729 = vadd.f32 %v688, %v728
    %730 = vmatmul.f32.gmra.mxu0 %v609
    %v731 = vpop.f32.mrf.mxu0
    %v732 = vadd.f32 %v691, %v731
    %733 = vmatmul.f32.gmra.mxu0 %v612
    %v734 = vpop.f32.mrf.mxu0
    %v735 = vadd.f32 %v694, %v734
    %736 = vmatmul.f32.gmra.mxu0 %v615
    %v737 = vpop.f32.mrf.mxu0
    %v738 = vadd.f32 %v697, %v737
    %739 = vmatmul.f32.gmra.mxu0 %v618
    %v740 = vpop.f32.mrf.mxu0
    %v741 = vadd.f32 %v700, %v740
    %742 = vmatmul.f32.gmra.mxu0 %v621
    %v743 = vpop.f32.mrf.mxu0
    %v744 = vadd.f32 %v703, %v743
    %745 = vmatmul.f32.gmra.mxu0 %v624
    %v746 = vpop.f32.mrf.mxu0
    %v747 = vadd.f32 %v706, %v746
    %748 = vdwg.mxu0
    %v749 = vld [vmem:[%s3] sm:$0x1]
    %v751 = vperm.slane %v749, 0
    %v753 = vmul.f32 %v726, %v751
    %v754 = vmul.f32 %v729, %v751
    %v755 = vmul.f32 %v732, %v751
    %v756 = vmul.f32 %v735, %v751
    %v757 = vmul.f32 %v738, %v751
    %v758 = vmul.f32 %v741, %v751
    %v759 = vmul.f32 %v744, %v751
    %v760 = vmul.f32 %v747, %v751
    %v761 = vld [vmem:[#allocation7] sm:$0x1]
    %v763 = vperm.slane %v761, 0
    %v765 = vadd.f32 %v753, %v763
    %v766 = vadd.f32 %v754, %v763
    %v767 = vadd.f32 %v755, %v763
    %v768 = vadd.f32 %v756, %v763
    %v769 = vadd.f32 %v757, %v763
    %v770 = vadd.f32 %v758, %v763
    %v771 = vadd.f32 %v759, %v763
    %v772 = vadd.f32 %v760, %v763
    %v773 = vmul.f32 %v765, 0.117071
    %v774 = vmul.f32 %v766, 0.117071
    %v775 = vmul.f32 %v767, 0.117071
    %v776 = vmul.f32 %v768, 0.117071
    %v777 = vmul.f32 %v769, 0.117071
    %v778 = vmul.f32 %v770, 0.117071
    %v779 = vmul.f32 %v771, 0.117071
    %v780 = vmul.f32 %v772, 0.117071
    %v781 = vmul.f32 %v773, %v765
    %v782 = vmul.f32 %v774, %v766
    %v783 = vmul.f32 %v775, %v767
    %v784 = vmul.f32 %v776, %v768
    %v785 = vmul.f32 %v777, %v769
    %v786 = vmul.f32 %v778, %v770
    %v787 = vmul.f32 %v779, %v771
    %v788 = vmul.f32 %v780, %v772
    %v789 = vmul.f32 %v765, 0.5
    %v790 = vmul.f32 %v766, 0.5
    %v791 = vmul.f32 %v767, 0.5
    %v792 = vmul.f32 %v768, 0.5
    %v793 = vmul.f32 %v769, 0.5
    %v794 = vmul.f32 %v770, 0.5
    %v795 = vmul.f32 %v771, 0.5
    %v796 = vmul.f32 %v772, 0.5
    %v797 = vadd.f32 %v781, %v789
    %v798 = vadd.f32 %v782, %v790
    %v799 = vadd.f32 %v783, %v791
    %v800 = vadd.f32 %v784, %v792
    %v801 = vadd.f32 %v785, %v793
    %v802 = vadd.f32 %v786, %v794
    %v803 = vadd.f32 %v787, %v795
    %v804 = vadd.f32 %v788, %v796
    %v805 = vadd.f32 %v797, 0.375373
    %v806 = vadd.f32 %v798, 0.375373
    %v807 = vadd.f32 %v799, 0.375373
    %v808 = vadd.f32 %v800, 0.375373
    %v809 = vadd.f32 %v801, 0.375373
    %v810 = vadd.f32 %v802, 0.375373
    %v811 = vadd.f32 %v803, 0.375373
    %v812 = vadd.f32 %v804, 0.375373
    %v813 = vpack.c.bf16 %v806, %v805
    %v814 = vpack.c.bf16 %v808, %v807
    %v815 = vpack.c.bf16 %v810, %v809
    %v816 = vpack.c.bf16 %v812, %v811
    %v817 = vld [vmem:[#allocation8] sm:$0xff]
    %v818 = vld [vmem:[#allocation8 + $0x8] sm:$0xf]
    %v819 = vld [vmem:[#allocation8 + $0xc] sm:$0xff]
    %v820 = vld [vmem:[#allocation8 + $0x14] sm:$0xf]
    %v821 = vld [vmem:[#allocation8 + $0x18] sm:$0xff]
    %v822 = vld [vmem:[#allocation8 + $0x20] sm:$0xf]
    %v823 = vld [vmem:[#allocation8 + $0x24] sm:$0xff]
    %v824 = vld [vmem:[#allocation8 + $0x2c] sm:$0xf]
    %v825 = vld [vmem:[#allocation8 + $0x30] sm:$0xff]
    %v826 = vld [vmem:[#allocation8 + $0x38] sm:$0xf]
    %v827 = vld [vmem:[#allocation8 + $0x3c] sm:$0xff]
    %v828 = vld [vmem:[#allocation8 + $0x44] sm:$0xf]
    %v829 = vld [vmem:[#allocation8 + $0x48] sm:$0xff]
    %v830 = vld [vmem:[#allocation8 + $0x50] sm:$0xf]
    %v831 = vld [vmem:[#allocation8 + $0x54] sm:$0xff]
    %v832 = vld [vmem:[#allocation8 + $0x5c] sm:$0xf]
    %v833 = vld [vmem:[#allocation8 + $0x60] sm:$0xff]
    %v834 = vld [vmem:[#allocation8 + $0x68] sm:$0xf]
    %v835 = vld [vmem:[#allocation8 + $0x6c] sm:$0xff]
    %v836 = vld [vmem:[#allocation8 + $0x74] sm:$0xf]
    %v837 = vld [vmem:[#allocation8 + $0x78] sm:$0xff]
    %v838 = vld [vmem:[#allocation8 + $0x80] sm:$0xf]
    %v839 = vld [vmem:[#allocation8 + $0x84] sm:$0xff]
    %v840 = vld [vmem:[#allocation8 + $0x8c] sm:$0xf]
    %v841 = vld [vmem:[#allocation8 + $0x90] sm:$0xff]
    %v842 = vld [vmem:[#allocation8 + $0x98] sm:$0xf]
    %v843 = vld [vmem:[#allocation8 + $0x9c] sm:$0xff]
    %v844 = vld [vmem:[#allocation8 + $0xa4] sm:$0xf]
    %v845 = vld [vmem:[#allocation8 + $0xa8] sm:$0xff]
    %v846 = vld [vmem:[#allocation8 + $0xb0] sm:$0xf]
    %v847 = vld [vmem:[#allocation8 + $0xb4] sm:$0xff]
    %v848 = vld [vmem:[#allocation8 + $0xbc] sm:$0xf]
    %v881 = vunpack.c.l.b16 %v817
    %v882 = vunpack.c.h.b16 %v817
    %v883 = vunpack.c.l.b16 %v818
    %v884 = vunpack.c.l.b16 %v819
    %v885 = vunpack.c.h.b16 %v819
    %v886 = vunpack.c.l.b16 %v820
    %v887 = vunpack.c.l.b16 %v821
    %v888 = vunpack.c.h.b16 %v821
    %v889 = vunpack.c.l.b16 %v822
    %v890 = vunpack.c.l.b16 %v823
    %v891 = vunpack.c.h.b16 %v823
    %v892 = vunpack.c.l.b16 %v824
    %v893 = vunpack.c.l.b16 %v825
    %v894 = vunpack.c.h.b16 %v825
    %v895 = vunpack.c.l.b16 %v826
    %v896 = vunpack.c.l.b16 %v827
    %v897 = vunpack.c.h.b16 %v827
    %v898 = vunpack.c.l.b16 %v828
    %v899 = vunpack.c.l.b16 %v829
    %v900 = vunpack.c.h.b16 %v829
    %v901 = vunpack.c.l.b16 %v830
    %v902 = vunpack.c.l.b16 %v831
    %v903 = vunpack.c.h.b16 %v831
    %v904 = vunpack.c.l.b16 %v832
    %v905 = vunpack.c.l.b16 %v833
    %v906 = vunpack.c.h.b16 %v833
    %v907 = vunpack.c.l.b16 %v834
    %v908 = vunpack.c.l.b16 %v835
    %v909 = vunpack.c.h.b16 %v835
    %v910 = vunpack.c.l.b16 %v836
    %v911 = vunpack.c.l.b16 %v837
    %v912 = vunpack.c.h.b16 %v837
    %v913 = vunpack.c.l.b16 %v838
    %v914 = vunpack.c.l.b16 %v839
    %v915 = vunpack.c.h.b16 %v839
    %v916 = vunpack.c.l.b16 %v840
    %v917 = vunpack.c.l.b16 %v841
    %v918 = vunpack.c.h.b16 %v841
    %v919 = vunpack.c.l.b16 %v842
    %v920 = vunpack.c.l.b16 %v843
    %v921 = vunpack.c.h.b16 %v843
    %v922 = vunpack.c.l.b16 %v844
    %v923 = vunpack.c.l.b16 %v845
    %v924 = vunpack.c.h.b16 %v845
    %v925 = vunpack.c.l.b16 %v846
    %v926 = vunpack.c.l.b16 %v847
    %v927 = vunpack.c.h.b16 %v847
    %v928 = vunpack.c.l.b16 %v848
    %v929 = vpack.c.b16 %v884, %v881
    %v930 = vpack.c.b16 %v885, %v882
    %v931 = vpack.c.b16 %v886, %v883
    %v932 = vpack.c.b16 %v890, %v887
    %v933 = vpack.c.b16 %v891, %v888
    %v934 = vpack.c.b16 %v892, %v889
    %v935 = vpack.c.b16 %v896, %v893
    %v936 = vpack.c.b16 %v897, %v894
    %v937 = vpack.c.b16 %v898, %v895
    %v938 = vpack.c.b16 %v902, %v899
    %v939 = vpack.c.b16 %v903, %v900
    %v940 = vpack.c.b16 %v904, %v901
    %v941 = vpack.c.b16 %v908, %v905
    %v942 = vpack.c.b16 %v909, %v906
    %v943 = vpack.c.b16 %v910, %v907
    %v944 = vpack.c.b16 %v914, %v911
    %v945 = vpack.c.b16 %v915, %v912
    %v946 = vpack.c.b16 %v916, %v913
    %v947 = vpack.c.b16 %v920, %v917
    %v948 = vpack.c.b16 %v921, %v918
    %v949 = vpack.c.b16 %v922, %v919
    %v950 = vpack.c.b16 %v926, %v923
    %v951 = vpack.c.b16 %v927, %v924
    %v952 = vpack.c.b16 %v928, %v925
    %977 = vmatpush.bf16.msra.mxu0 %v950
    %978 = vmatpush.bf16.msra.mxu0 %v947
    %979 = vmatpush.bf16.msra.mxu0 %v944
    %980 = vmatpush.bf16.msra.mxu0 %v941
    %981 = vmatpush.bf16.msra.mxu0 %v938
    %982 = vmatpush.bf16.msra.mxu0 %v935
    %983 = vmatpush.bf16.msra.mxu0 %v932
    %984 = vmatpush.bf16.msra.mxu0 %v929
    %985 = vmatmul.bf16.gmra.mxu0 %v813
    %v986 = vpop.f32.mrf.mxu0
    %v987 = vadd.f32 0.0, %v986
    %v988 = vpop.f32.mrf.mxu0
    %v989 = vadd.f32 0.0, %v988
    %990 = vmatmul.bf16.gmra.mxu0 %v814
    %v991 = vpop.f32.mrf.mxu0
    %v992 = vadd.f32 0.0, %v991
    %v993 = vpop.f32.mrf.mxu0
    %v994 = vadd.f32 0.0, %v993
    %995 = vmatmul.bf16.gmra.mxu0 %v815
    %v996 = vpop.f32.mrf.mxu0
    %v997 = vadd.f32 0.0, %v996
    %v998 = vpop.f32.mrf.mxu0
    %v999 = vadd.f32 0.0, %v998
    %1000 = vmatmul.bf16.gmra.mxu0 %v816
    %v1001 = vpop.f32.mrf.mxu0
    %v1002 = vadd.f32 0.0, %v1001
    %v1003 = vpop.f32.mrf.mxu0
    %v1004 = vadd.f32 0.0, %v1003
    %1005 = vdwg.mxu0
    %1006 = vmatpush.bf16.msra.mxu0 %v951
    %1007 = vmatpush.bf16.msra.mxu0 %v948
    %1008 = vmatpush.bf16.msra.mxu0 %v945
    %1009 = vmatpush.bf16.msra.mxu0 %v942
    %1010 = vmatpush.bf16.msra.mxu0 %v939
    %1011 = vmatpush.bf16.msra.mxu0 %v936
    %1012 = vmatpush.bf16.msra.mxu0 %v933
    %1013 = vmatpush.bf16.msra.mxu0 %v930
    %1014 = vmatmul.bf16.gmra.mxu0 %v813
    %v1015 = vpop.f32.mrf.mxu0
    %v1016 = vadd.f32 0.0, %v1015
    %v1017 = vpop.f32.mrf.mxu0
    %v1018 = vadd.f32 0.0, %v1017
    %1019 = vmatmul.bf16.gmra.mxu0 %v814
    %v1020 = vpop.f32.mrf.mxu0
    %v1021 = vadd.f32 0.0, %v1020
    %v1022 = vpop.f32.mrf.mxu0
    %v1023 = vadd.f32 0.0, %v1022
    %1024 = vmatmul.bf16.gmra.mxu0 %v815
    %v1025 = vpop.f32.mrf.mxu0
    %v1026 = vadd.f32 0.0, %v1025
    %v1027 = vpop.f32.mrf.mxu0
    %v1028 = vadd.f32 0.0, %v1027
    %1029 = vmatmul.bf16.gmra.mxu0 %v816
    %v1030 = vpop.f32.mrf.mxu0
    %v1031 = vadd.f32 0.0, %v1030
    %v1032 = vpop.f32.mrf.mxu0
    %v1033 = vadd.f32 0.0, %v1032
    %1034 = vdwg.mxu0
    %1035 = vmatpush.bf16.msra.mxu0 %v952
    %1036 = vmatpush.bf16.msra.mxu0 %v949
    %1037 = vmatpush.bf16.msra.mxu0 %v946
    %1038 = vmatpush.bf16.msra.mxu0 %v943
    %1039 = vmatpush.bf16.msra.mxu0 %v940
    %1040 = vmatpush.bf16.msra.mxu0 %v937
    %1041 = vmatpush.bf16.msra.mxu0 %v934
    %1042 = vmatpush.bf16.msra.mxu0 %v931
    %1043 = vmatmul.bf16.gmra.mxu0 %v813
    %v1044 = vpop.f32.mrf.mxu0
    %v1045 = vadd.f32 0.0, %v1044
    %v1046 = vpop.f32.mrf.mxu0
    %v1047 = vadd.f32 0.0, %v1046
    %1048 = vmatmul.bf16.gmra.mxu0 %v814
    %v1049 = vpop.f32.mrf.mxu0
    %v1050 = vadd.f32 0.0, %v1049
    %v1051 = vpop.f32.mrf.mxu0
    %v1052 = vadd.f32 0.0, %v1051
    %1053 = vmatmul.bf16.gmra.mxu0 %v815
    %v1054 = vpop.f32.mrf.mxu0
    %v1055 = vadd.f32 0.0, %v1054
    %v1056 = vpop.f32.mrf.mxu0
    %v1057 = vadd.f32 0.0, %v1056
    %1058 = vmatmul.bf16.gmra.mxu0 %v816
    %v1059 = vpop.f32.mrf.mxu0
    %v1060 = vadd.f32 0.0, %v1059
    %v1061 = vpop.f32.mrf.mxu0
    %v1062 = vadd.f32 0.0, %v1061
    %1063 = vdwg.mxu0
    %v1064 = vld [vmem:[%s6] sm:$0xff]
    %v1065 = vld [vmem:[%s6 + $0x8] sm:$0xff]
    %v1066 = vld [vmem:[%s6 + $0x10] sm:$0xff]
    %v1067 = vld [vmem:[%s6 + $0x18] sm:$0xff]
    %v1068 = vld [vmem:[%s6 + $0x20] sm:$0xff]
    %v1069 = vld [vmem:[%s6 + $0x28] sm:$0xff]
    %v1070 = vld [vmem:[%s6 + $0x30] sm:$0xff]
    %v1071 = vld [vmem:[%s6 + $0x38] sm:$0xff]
    %v1072 = vld [vmem:[%s7] sm:$0x1]
    %v1074 = vperm.slane %v1072, 0
    %v1077 = vsel %vm601, %v1065, 0
    %v1080 = vsel %vm601, %v1067, 0
    %v1083 = vsel %vm601, %v1069, 0
    %v1086 = vsel %vm601, %v1071, 0
    %1088 = vmatpush.msra.mxu0 %v1033
    %1089 = vmatpush.msra.mxu0 %v1031
    %1090 = vmatpush.msra.mxu0 %v1028
    %1091 = vmatpush.msra.mxu0 %v1026
    %1092 = vmatpush.msra.mxu0 %v1023
    %1093 = vmatpush.msra.mxu0 %v1021
    %1094 = vmatpush.msra.mxu0 %v1018
    %1095 = vmatpush.msra.mxu0 %v1016
    %1096 = vmatpush.msra.mxu0 %v1004
    %1097 = vmatpush.msra.mxu0 %v1002
    %1098 = vmatpush.msra.mxu0 %v999
    %1099 = vmatpush.msra.mxu0 %v997
    %1100 = vmatpush.msra.mxu0 %v994
    %1101 = vmatpush.msra.mxu0 %v992
    %1102 = vmatpush.msra.mxu0 %v989
    %1103 = vmatpush.msra.mxu0 %v987
    %1104 = vmatmul.f32.gmra.mxu0 %v1064
    %v1105 = vpop.f32.mrf.mxu0
    %v1106 = vadd.f32 %v1074, %v1105
    %1107 = vmatmul.f32.gmra.mxu0 %v1066
    %v1108 = vpop.f32.mrf.mxu0
    %v1109 = vadd.f32 %v1074, %v1108
    %1110 = vmatmul.f32.gmra.mxu0 %v1068
    %v1111 = vpop.f32.mrf.mxu0
    %v1112 = vadd.f32 %v1074, %v1111
    %1113 = vmatmul.f32.gmra.mxu0 %v1070
    %v1114 = vpop.f32.mrf.mxu0
    %v1115 = vadd.f32 %v1074, %v1114
    %1116 = vdwg.mxu0
    %1117 = vmatpush.msra.mxu0 0.0
    %1118 = vmatpush.msra.mxu0 0.0
    %1119 = vmatpush.msra.mxu0 0.0
    %1120 = vmatpush.msra.mxu0 0.0
    %1121 = vmatpush.msra.mxu0 0.0
    %1122 = vmatpush.msra.mxu0 0.0
    %1123 = vmatpush.msra.mxu0 0.0
    %1124 = vmatpush.msra.mxu0 0.0
    %1125 = vmatpush.msra.mxu0 %v1062
    %1126 = vmatpush.msra.mxu0 %v1060
    %1127 = vmatpush.msra.mxu0 %v1057
    %1128 = vmatpush.msra.mxu0 %v1055
    %1129 = vmatpush.msra.mxu0 %v1052
    %1130 = vmatpush.msra.mxu0 %v1050
    %1131 = vmatpush.msra.mxu0 %v1047
    %1132 = vmatpush.msra.mxu0 %v1045
    %1133 = vmatmul.f32.gmra.mxu0 %v1077
    %v1134 = vpop.f32.mrf.mxu0
    %v1135 = vadd.f32 %v1106, %v1134
    %1136 = vmatmul.f32.gmra.mxu0 %v1080
    %v1137 = vpop.f32.mrf.mxu0
    %v1138 = vadd.f32 %v1109, %v1137
    %1139 = vmatmul.f32.gmra.mxu0 %v1083
    %v1140 = vpop.f32.mrf.mxu0
    %v1141 = vadd.f32 %v1112, %v1140
    %1142 = vmatmul.f32.gmra.mxu0 %v1086
    %v1143 = vpop.f32.mrf.mxu0
    %v1144 = vadd.f32 %v1115, %v1143
    %1145 = vdwg.mxu0
    %v1146 = vpack.c.bf16 %v1138, %v1135
    %v1147 = vpack.c.bf16 %v1144, %v1141
    %v1148 = vld [vmem:[#allocation10] sm:$0xff]
    %v1149 = vld [vmem:[#allocation10 + $0x8] sm:$0xf]
    %v1150 = vld [vmem:[#allocation10 + $0xc] sm:$0xff]
    %v1151 = vld [vmem:[#allocation10 + $0x14] sm:$0xf]
    %v1152 = vld [vmem:[#allocation10 + $0x18] sm:$0xff]
    %v1153 = vld [vmem:[#allocation10 + $0x20] sm:$0xf]
    %v1154 = vld [vmem:[#allocation10 + $0x24] sm:$0xff]
    %v1155 = vld [vmem:[#allocation10 + $0x2c] sm:$0xf]
    %v1156 = vld [vmem:[#allocation10 + $0x30] sm:$0xff]
    %v1157 = vld [vmem:[#allocation10 + $0x38] sm:$0xf]
    %v1158 = vld [vmem:[#allocation10 + $0x3c] sm:$0xff]
    %v1159 = vld [vmem:[#allocation10 + $0x44] sm:$0xf]
    %v1160 = vld [vmem:[#allocation10 + $0x48] sm:$0xff]
    %v1161 = vld [vmem:[#allocation10 + $0x50] sm:$0xf]
    %v1162 = vld [vmem:[#allocation10 + $0x54] sm:$0xff]
    %v1163 = vld [vmem:[#allocation10 + $0x5c] sm:$0xf]
    %v1164 = vld [vmem:[#allocation10 + $0x60] sm:$0xff]
    %v1165 = vld [vmem:[#allocation10 + $0x68] sm:$0xf]
    %v1166 = vld [vmem:[#allocation10 + $0x6c] sm:$0xff]
    %v1167 = vld [vmem:[#allocation10 + $0x74] sm:$0xf]
    %v1168 = vld [vmem:[#allocation10 + $0x78] sm:$0xff]
    %v1169 = vld [vmem:[#allocation10 + $0x80] sm:$0xf]
    %v1170 = vld [vmem:[#allocation10 + $0x84] sm:$0xff]
    %v1171 = vld [vmem:[#allocation10 + $0x8c] sm:$0xf]
    %v1172 = vld [vmem:[#allocation10 + $0x90] sm:$0xff]
    %v1173 = vld [vmem:[#allocation10 + $0x98] sm:$0xf]
    %v1174 = vld [vmem:[#allocation10 + $0x9c] sm:$0xff]
    %v1175 = vld [vmem:[#allocation10 + $0xa4] sm:$0xf]
    %v1176 = vld [vmem:[#allocation10 + $0xa8] sm:$0xff]
    %v1177 = vld [vmem:[#allocation10 + $0xb0] sm:$0xf]
    %v1178 = vld [vmem:[#allocation10 + $0xb4] sm:$0xff]
    %v1179 = vld [vmem:[#allocation10 + $0xbc] sm:$0xf]
    %v1212 = vunpack.c.l.b16 %v1148
    %v1213 = vunpack.c.h.b16 %v1148
    %v1214 = vunpack.c.l.b16 %v1149
    %v1215 = vunpack.c.l.b16 %v1150
    %v1216 = vunpack.c.h.b16 %v1150
    %v1217 = vunpack.c.l.b16 %v1151
    %v1218 = vunpack.c.l.b16 %v1152
    %v1219 = vunpack.c.h.b16 %v1152
    %v1220 = vunpack.c.l.b16 %v1153
    %v1221 = vunpack.c.l.b16 %v1154
    %v1222 = vunpack.c.h.b16 %v1154
    %v1223 = vunpack.c.l.b16 %v1155
    %v1224 = vunpack.c.l.b16 %v1156
    %v1225 = vunpack.c.h.b16 %v1156
    %v1226 = vunpack.c.l.b16 %v1157
    %v1227 = vunpack.c.l.b16 %v1158
    %v1228 = vunpack.c.h.b16 %v1158
    %v1229 = vunpack.c.l.b16 %v1159
    %v1230 = vunpack.c.l.b16 %v1160
    %v1231 = vunpack.c.h.b16 %v1160
    %v1232 = vunpack.c.l.b16 %v1161
    %v1233 = vunpack.c.l.b16 %v1162
    %v1234 = vunpack.c.h.b16 %v1162
    %v1235 = vunpack.c.l.b16 %v1163
    %v1236 = vunpack.c.l.b16 %v1164
    %v1237 = vunpack.c.h.b16 %v1164
    %v1238 = vunpack.c.l.b16 %v1165
    %v1239 = vunpack.c.l.b16 %v1166
    %v1240 = vunpack.c.h.b16 %v1166
    %v1241 = vunpack.c.l.b16 %v1167
    %v1242 = vunpack.c.l.b16 %v1168
    %v1243 = vunpack.c.h.b16 %v1168
    %v1244 = vunpack.c.l.b16 %v1169
    %v1245 = vunpack.c.l.b16 %v1170
    %v1246 = vunpack.c.h.b16 %v1170
    %v1247 = vunpack.c.l.b16 %v1171
    %v1248 = vunpack.c.l.b16 %v1172
    %v1249 = vunpack.c.h.b16 %v1172
    %v1250 = vunpack.c.l.b16 %v1173
    %v1251 = vunpack.c.l.b16 %v1174
    %v1252 = vunpack.c.h.b16 %v1174
    %v1253 = vunpack.c.l.b16 %v1175
    %v1254 = vunpack.c.l.b16 %v1176
    %v1255 = vunpack.c.h.b16 %v1176
    %v1256 = vunpack.c.l.b16 %v1177
    %v1257 = vunpack.c.l.b16 %v1178
    %v1258 = vunpack.c.h.b16 %v1178
    %v1259 = vunpack.c.l.b16 %v1179
    %v1260 = vpack.c.b16 %v1215, %v1212
    %v1261 = vpack.c.b16 %v1216, %v1213
    %v1262 = vpack.c.b16 %v1217, %v1214
    %v1263 = vpack.c.b16 %v1221, %v1218
    %v1264 = vpack.c.b16 %v1222, %v1219
    %v1265 = vpack.c.b16 %v1223, %v1220
    %v1266 = vpack.c.b16 %v1227, %v1224
    %v1267 = vpack.c.b16 %v1228, %v1225
    %v1268 = vpack.c.b16 %v1229, %v1226
    %v1269 = vpack.c.b16 %v1233, %v1230
    %v1270 = vpack.c.b16 %v1234, %v1231
    %v1271 = vpack.c.b16 %v1235, %v1232
    %v1272 = vpack.c.b16 %v1239, %v1236
    %v1273 = vpack.c.b16 %v1240, %v1237
    %v1274 = vpack.c.b16 %v1241, %v1238
    %v1275 = vpack.c.b16 %v1245, %v1242
    %v1276 = vpack.c.b16 %v1246, %v1243
    %v1277 = vpack.c.b16 %v1247, %v1244
    %v1278 = vpack.c.b16 %v1251, %v1248
    %v1279 = vpack.c.b16 %v1252, %v1249
    %v1280 = vpack.c.b16 %v1253, %v1250
    %v1281 = vpack.c.b16 %v1257, %v1254
    %v1282 = vpack.c.b16 %v1258, %v1255
    %v1283 = vpack.c.b16 %v1259, %v1256
    %1308 = vmatpush.bf16.msra.mxu0 %v1281
    %1309 = vmatpush.bf16.msra.mxu0 %v1278
    %1310 = vmatpush.bf16.msra.mxu0 %v1275
    %1311 = vmatpush.bf16.msra.mxu0 %v1272
    %1312 = vmatpush.bf16.msra.mxu0 %v1269
    %1313 = vmatpush.bf16.msra.mxu0 %v1266
    %1314 = vmatpush.bf16.msra.mxu0 %v1263
    %1315 = vmatpush.bf16.msra.mxu0 %v1260
    %1316 = vmatmul.bf16.gmra.mxu0 %v1146
    %v1317 = vpop.f32.mrf.mxu0
    %v1318 = vadd.f32 0.0, %v1317
    %v1319 = vpop.f32.mrf.mxu0
    %v1320 = vadd.f32 0.0, %v1319
    %1321 = vmatmul.bf16.gmra.mxu0 %v1147
    %v1322 = vpop.f32.mrf.mxu0
    %v1323 = vadd.f32 0.0, %v1322
    %v1324 = vpop.f32.mrf.mxu0
    %v1325 = vadd.f32 0.0, %v1324
    %1326 = vdwg.mxu0
    %1327 = vmatpush.bf16.msra.mxu0 %v1282
    %1328 = vmatpush.bf16.msra.mxu0 %v1279
    %1329 = vmatpush.bf16.msra.mxu0 %v1276
    %1330 = vmatpush.bf16.msra.mxu0 %v1273
    %1331 = vmatpush.bf16.msra.mxu0 %v1270
    %1332 = vmatpush.bf16.msra.mxu0 %v1267
    %1333 = vmatpush.bf16.msra.mxu0 %v1264
    %1334 = vmatpush.bf16.msra.mxu0 %v1261
    %1335 = vmatmul.bf16.gmra.mxu0 %v1146
    %v1336 = vpop.f32.mrf.mxu0
    %v1337 = vadd.f32 0.0, %v1336
    %v1338 = vpop.f32.mrf.mxu0
    %v1339 = vadd.f32 0.0, %v1338
    %1340 = vmatmul.bf16.gmra.mxu0 %v1147
    %v1341 = vpop.f32.mrf.mxu0
    %v1342 = vadd.f32 0.0, %v1341
    %v1343 = vpop.f32.mrf.mxu0
    %v1344 = vadd.f32 0.0, %v1343
    %1345 = vdwg.mxu0
    %1346 = vmatpush.bf16.msra.mxu0 %v1283
    %1347 = vmatpush.bf16.msra.mxu0 %v1280
    %1348 = vmatpush.bf16.msra.mxu0 %v1277
    %1349 = vmatpush.bf16.msra.mxu0 %v1274
    %1350 = vmatpush.bf16.msra.mxu0 %v1271
    %1351 = vmatpush.bf16.msra.mxu0 %v1268
    %1352 = vmatpush.bf16.msra.mxu0 %v1265
    %1353 = vmatpush.bf16.msra.mxu0 %v1262
    %1354 = vmatmul.bf16.gmra.mxu0 %v1146
    %v1355 = vpop.f32.mrf.mxu0
    %v1356 = vadd.f32 0.0, %v1355
    %v1357 = vpop.f32.mrf.mxu0
    %v1358 = vadd.f32 0.0, %v1357
    %1359 = vmatmul.bf16.gmra.mxu0 %v1147
    %v1360 = vpop.f32.mrf.mxu0
    %v1361 = vadd.f32 0.0, %v1360
    %v1362 = vpop.f32.mrf.mxu0
    %v1363 = vadd.f32 0.0, %v1362
    %1364 = vdwg.mxu0
    %v1365 = vld [vmem:[%s9] sm:$0xff]
    %v1366 = vld [vmem:[%s9 + $0x8] sm:$0xff]
    %vm1367 = vcmask 785408
    %v1369 = vsel %vm1367, %v1365, 0
    %v1372 = vsel %vm1367, %v1366, 0
    %1374 = vmatpush.msra.mxu0 0.0
    %1375 = vmatpush.msra.mxu0 0.0
    %1376 = vmatpush.msra.mxu0 0.0
    %1377 = vmatpush.msra.mxu0 0.0
    %1378 = vmatpush.msra.mxu0 %v1363
    %1379 = vmatpush.msra.mxu0 %v1361
    %1380 = vmatpush.msra.mxu0 %v1358
    %1381 = vmatpush.msra.mxu0 %v1356
    %1382 = vmatpush.msra.mxu0 %v1344
    %1383 = vmatpush.msra.mxu0 %v1342
    %1384 = vmatpush.msra.mxu0 %v1339
    %1385 = vmatpush.msra.mxu0 %v1337
    %1386 = vmatpush.msra.mxu0 %v1325
    %1387 = vmatpush.msra.mxu0 %v1323
    %1388 = vmatpush.msra.mxu0 %v1320
    %1389 = vmatpush.msra.mxu0 %v1318
    %1390 = vmatmul.f32.gmra.mxu0 %v1369
    %v1391 = vpop.f32.mrf.mxu0
    %v1392 = vadd.f32 0.0, %v1391
    %1393 = vmatmul.f32.gmra.mxu0 %v1372
    %v1394 = vpop.f32.mrf.mxu0
    %v1395 = vadd.f32 0.0, %v1394
    %1396 = vdwg.mxu0
    %v1397 = vld [vmem:[%s10] sm:$0x1]
    %v1399 = vperm.slane %v1397, 0
    %v1401 = vmul.f32 %v1392, %v1399
    %v1402 = vmul.f32 %v1395, %v1399
    %v1403 = vld [vmem:[%s11] sm:$0x1]
    %v1405 = vperm.slane %v1403, 0
    %v1407 = vadd.f32 %v1401, %v1405
    %v1408 = vadd.f32 %v1402, %v1405
    %v1409 = vmul.f32 %v1407, 0.117071
    %v1410 = vmul.f32 %v1408, 0.117071
    %v1411 = vmul.f32 %v1409, %v1407
    %v1412 = vmul.f32 %v1410, %v1408
    %v1413 = vmul.f32 %v1407, 0.5
    %v1414 = vmul.f32 %v1408, 0.5
    %v1415 = vadd.f32 %v1411, %v1413
    %v1416 = vadd.f32 %v1412, %v1414
    %v1417 = vadd.f32 %v1415, 0.375373
    %v1418 = vadd.f32 %v1416, 0.375373
    %v1419 = vpack.c.bf16 %v1418, %v1417
    %v1420 = vld [vmem:[#allocation11] sm:$0xf]
    %v1421 = vld [vmem:[#allocation11 + $0x4] sm:$0xf]
    %v1422 = vld [vmem:[#allocation11 + $0x8] sm:$0xf]
    %v1423 = vld [vmem:[#allocation11 + $0xc] sm:$0xf]
    %v1424 = vld [vmem:[#allocation11 + $0x10] sm:$0xf]
    %v1425 = vld [vmem:[#allocation11 + $0x14] sm:$0xf]
    %v1426 = vld [vmem:[#allocation11 + $0x18] sm:$0xf]
    %v1427 = vld [vmem:[#allocation11 + $0x1c] sm:$0xf]
    %v1428 = vld [vmem:[#allocation11 + $0x20] sm:$0xf]
    %v1429 = vld [vmem:[#allocation11 + $0x24] sm:$0xf]
    %v1430 = vld [vmem:[#allocation11 + $0x28] sm:$0xf]
    %v1431 = vld [vmem:[#allocation11 + $0x2c] sm:$0xf]
    %v1432 = vld [vmem:[#allocation11 + $0x30] sm:$0xf]
    %v1433 = vld [vmem:[#allocation11 + $0x34] sm:$0xf]
    %v1434 = vld [vmem:[#allocation11 + $0x38] sm:$0xf]
    %v1435 = vld [vmem:[#allocation11 + $0x3c] sm:$0xf]
    %v1452 = vunpack.c.l.b16 %v1420
    %v1453 = vunpack.c.l.b16 %v1421
    %v1454 = vunpack.c.l.b16 %v1422
    %v1455 = vunpack.c.l.b16 %v1423
    %v1456 = vunpack.c.l.b16 %v1424
    %v1457 = vunpack.c.l.b16 %v1425
    %v1458 = vunpack.c.l.b16 %v1426
    %v1459 = vunpack.c.l.b16 %v1427
    %v1460 = vunpack.c.l.b16 %v1428
    %v1461 = vunpack.c.l.b16 %v1429
    %v1462 = vunpack.c.l.b16 %v1430
    %v1463 = vunpack.c.l.b16 %v1431
    %v1464 = vunpack.c.l.b16 %v1432
    %v1465 = vunpack.c.l.b16 %v1433
    %v1466 = vunpack.c.l.b16 %v1434
    %v1467 = vunpack.c.l.b16 %v1435
    %v1468 = vpack.c.b16 %v1453, %v1452
    %v1469 = vpack.c.b16 %v1455, %v1454
    %v1470 = vpack.c.b16 %v1457, %v1456
    %v1471 = vpack.c.b16 %v1459, %v1458
    %v1472 = vpack.c.b16 %v1461, %v1460
    %v1473 = vpack.c.b16 %v1463, %v1462
    %v1474 = vpack.c.b16 %v1465, %v1464
    %v1475 = vpack.c.b16 %v1467, %v1466
    %1484 = vmatpush.bf16.msra.mxu0 %v1475
    %1485 = vmatpush.bf16.msra.mxu0 %v1474
    %1486 = vmatpush.bf16.msra.mxu0 %v1473
    %1487 = vmatpush.bf16.msra.mxu0 %v1472
    %1488 = vmatpush.bf16.msra.mxu0 %v1471
    %1489 = vmatpush.bf16.msra.mxu0 %v1470
    %1490 = vmatpush.bf16.msra.mxu0 %v1469
    %1491 = vmatpush.bf16.msra.mxu0 %v1468
    %1492 = vmatmul.bf16.gmra.mxu0 %v1419
    %v1493 = vpop.f32.mrf.mxu0
    %v1494 = vadd.f32 0.0, %v1493
    %v1495 = vpop.f32.mrf.mxu0
    %v1496 = vadd.f32 0.0, %v1495
    %1497 = vdwg.mxu0
    %v1498 = vld [vmem:[#allocation13] sm:$0xff]
    %v1499 = vld [vmem:[#allocation13 + $0x8] sm:$0xff]
    %v1500 = vmul.f32 %v1494, %v1498
    %v1501 = vmul.f32 %v1496, %v1499
    %v1502 = vld [vmem:[%s14] sm:$0x3]
    %vm1503 = vcmask 130048
    %v1505 = vsel %vm1503, %v1502, 0
    %1507 = vmatpush.msra.mxu0 0.0
    %1508 = vmatpush.msra.mxu0 0.0
    %1509 = vmatpush.msra.mxu0 0.0
    %1510 = vmatpush.msra.mxu0 0.0
    %1511 = vmatpush.msra.mxu0 0.0
    %1512 = vmatpush.msra.mxu0 0.0
    %1513 = vmatpush.msra.mxu0 0.0
    %1514 = vmatpush.msra.mxu0 0.0
    %1515 = vmatpush.msra.mxu0 0.0
    %1516 = vmatpush.msra.mxu0 0.0
    %1517 = vmatpush.msra.mxu0 0.0
    %1518 = vmatpush.msra.mxu0 0.0
    %1519 = vmatpush.msra.mxu0 0.0
    %1520 = vmatpush.msra.mxu0 0.0
    %1521 = vmatpush.msra.mxu0 %v1501
    %1522 = vmatpush.msra.mxu0 %v1500
    %1523 = vmatmul.f32.gmra.mxu0 %v1505
    %v1524 = vpop.f32.mrf.mxu0
    %v1525 = vadd.f32 0.0, %v1524
    %1526 = vdwg.mxu0
    %v1527 = vld [vmem:[%s15] sm:$0xff]
    %v1528 = vld [vmem:[%s15 + $0x8] sm:$0xff]
    %v1529 = vld [vmem:[%s15 + $0x10] sm:$0xff]
    %v1530 = vld [vmem:[%s15 + $0x18] sm:$0xff]
    %v1531 = vld [vmem:[%s15 + $0x20] sm:$0xff]
    %v1532 = vld [vmem:[%s15 + $0x28] sm:$0xff]
    %v1533 = vld [vmem:[%s15 + $0x30] sm:$0xff]
    %v1534 = vld [vmem:[%s15 + $0x38] sm:$0xff]
    %v1535 = vld [vmem:[%s15 + $0x40] sm:$0xff]
    %v1536 = vld [vmem:[%s15 + $0x48] sm:$0xff]
    %v1537 = vld [vmem:[%s15 + $0x50] sm:$0xff]
    %v1538 = vld [vmem:[%s15 + $0x58] sm:$0xff]
    %v1539 = vld [vmem:[%s15 + $0x60] sm:$0xff]
    %v1540 = vld [vmem:[%s15 + $0x68] sm:$0xff]
    %v1541 = vld [vmem:[%s15 + $0x70] sm:$0xff]
    %v1542 = vld [vmem:[%s15 + $0x78] sm:$0xff]
    %v1543 = vld [vmem:[%s16] sm:$0x1]
    %v1545 = vperm.slane %v1543, 0
    %1547 = vmatpush.msra.mxu0 %v1542
    %1548 = vmatpush.msra.mxu0 %v1541
    %1549 = vmatpush.msra.mxu0 %v1540
    %1550 = vmatpush.msra.mxu0 %v1539
    %1551 = vmatpush.msra.mxu0 %v1538
    %1552 = vmatpush.msra.mxu0 %v1537
    %1553 = vmatpush.msra.mxu0 %v1536
    %1554 = vmatpush.msra.mxu0 %v1535
    %1555 = vmatpush.msra.mxu0 %v1534
    %1556 = vmatpush.msra.mxu0 %v1533
    %1557 = vmatpush.msra.mxu0 %v1532
    %1558 = vmatpush.msra.mxu0 %v1531
    %1559 = vmatpush.msra.mxu0 %v1530
    %1560 = vmatpush.msra.mxu0 %v1529
    %1561 = vmatpush.msra.mxu0 %v1528
    %1562 = vmatpush.msra.mxu0 %v1527
    %1563 = vmatmul.f32.gmra.mxu0 %v1525
    %v1564 = vpop.f32.mrf.mxu0
    %v1565 = vadd.f32 %v1545, %v1564
    %1566 = vdwg.mxu0
    %vm1567 = vcmask 74752
    %1568 = vst.msk [vmem:[#allocation14] sm:$0x3] %vm1567, %v1565
    // Predicated region
    $region98: #{tpu_custom_call.1} parent=1 // pred_check
      _
    $region99: #{tpu_custom_call.1} parent=1 // pred_check_branch
      %1570 = sbr.rel (0) target = $region101
    $region100: #{tpu_custom_call.1} parent=1 // pred_region
      %1572 = vsyncadd [#allocation4], 0
      %s1574 = sshll.u32 [#allocation14], 4
      %s1575 = int_to_ptr.vmem [resolvable:$true] %s1574
      %s1576 = sshll.u32 %s17, 4
      %s1577 = int_to_ptr.hbm [resolvable:$true] %s1576
      %1579 = dma.vmem_to_hbm [thread:$0]  %s1575, 32, %s1577, [#allocation4]
    $region101: #{tpu_custom_call.1} parent=1 // pred_fallthru
      _
    // Predicated region
    $region102: #{tpu_custom_call.1} parent=1 // pred_check
      _
    $region103: #{tpu_custom_call.1} parent=1 // pred_check_branch
      %1581 = sbr.rel (0) target = $region105
    $region104: #{tpu_custom_call.1} parent=1 // pred_region
      %1583 = dma.done [#allocation4], 32
    $region105: #{tpu_custom_call.1} parent=1 // pred_fallthru
      _
    %1584 = vsyncpa [#allocation3], 1
    %1585 = vsyncpa [#allocation6], 1
    %1586 = vsyncpa [#allocation9], 1
    %1587 = vsyncpa [#allocation12], 1
    %1588 = vsyncpa [#allocation4], 1

</llo_original>
